<compile_context>
chip_gen: v7x
topology: tpu7x:2x2x1
jax: 0.10.0
libtpu: 0.0.40
codegen_flags: <defaults>
</compile_context>

<pallas_src>
import functools

import jax
import jax.numpy as jnp
from jax.experimental import pallas as pl
from jax.experimental.pallas import tpu as pltpu

ALPHA = 0.2
BETA = 1.0


# ------------------------------ fused kernel ------------------------------- #

def _bottleneck_kernel(*refs, add, H, W):
    """One grid step = one image.

    refs = (x, w1, b1, w2, b2, [gain_over_beta], out, y1pad_scratch, slab_scratch)
    """
    if add:
        (x_ref, w1_ref, b1_ref, w2_ref, b2_ref, gob_ref,
         o_ref, y1p_ref, slab_ref) = refs
    else:
        (x_ref, w1_ref, b1_ref, w2_ref, b2_ref,
         o_ref, y1p_ref, slab_ref) = refs
        gob_ref = None

    Cm = y1p_ref.shape[-1]
    C2 = o_ref.shape[-1]
    HW = H * W

    # ---- cv1: 1x1 conv + bias + SiLU (bf16 MXU operands, f32 accumulation) ----
    x = x_ref[0]                                       # (H, W, C1) f32
    x2d = x.reshape(HW, x.shape[-1])                   # free when W % 8 == 0
    t1 = jnp.dot(x2d.astype(jnp.bfloat16), w1_ref[...],
                 preferred_element_type=jnp.float32) + b1_ref[...]
    y1 = t1 * jax.nn.sigmoid(t1)                       # (HW, Cm) f32

    # ---- zero only the 1-pixel border of the padded scratch (cheap, per step) ----
    y1p_ref[0:1, :, :] = jnp.zeros((1, W + 2, Cm), y1p_ref.dtype)
    y1p_ref[H + 1:H + 2, :, :] = jnp.zeros((1, W + 2, Cm), y1p_ref.dtype)
    y1p_ref[:, 0:1, :] = jnp.zeros((H + 2, 1, Cm), y1p_ref.dtype)
    y1p_ref[:, W + 1:W + 2, :] = jnp.zeros((H + 2, 1, Cm), y1p_ref.dtype)

    # ---- scatter cv1's output into the interior (borders stay zero) ----
    y1p_ref[1:H + 1, 1:W + 1, :] = y1.reshape(H, W, Cm)

    # ---- im2col slab in VMEM: 9 shifted (H, W, Cm) windows -> (H, W, 9*Cm) ----
    for dy in range(3):
        for dx in range(3):
            t = dy * 3 + dx
            slab_ref[:, :, t * Cm:(t + 1) * Cm] = (
                y1p_ref[dy:dy + H, dx:dx + W, :].astype(slab_ref.dtype))

    # ---- cv2: one (HW, 9*Cm) x (9*Cm, C2) MXU matmul, f32 accumulation ----
    t2 = jnp.dot(slab_ref[...].reshape(HW, 9 * Cm), w2_ref[...],
                 preferred_element_type=jnp.float32) + b2_ref[...]
    y2 = t2 * jax.nn.sigmoid(t2)                       # (HW, C2) f32

    # ---- residual (gain/beta pre-folded into one SMEM scalar) ----
    if add:
        out2d = ALPHA * x2d + y2 * gob_ref[0, 0]
    else:
        out2d = y2
    o_ref[0] = out2d.reshape(H, W, C2).astype(o_ref.dtype)


# --------------------------------- wrapper ---------------------------------- #

def bottleneck_forward(x_nhwc, w1_pt, b1, w2_pt, b2, gain, *, add=True):
    """x_nhwc: (N, H, W, C1) float32.  Weights in PyTorch layout:
       w1_pt (Cm, C1, 1, 1), w2_pt (C2, Cm, 3, 3)."""
    N, H, W, C1 = x_nhwc.shape
    Cm = w1_pt.shape[0]
    C2 = w2_pt.shape[0]
    if add:
        assert C1 == C2, "residual add requires c1 == c2"

    # weights in matmul layout; bf16 for the MXU (accumulation stays f32)
    w1 = jnp.transpose(w1_pt[:, :, 0, 0], (1, 0)).astype(jnp.bfloat16)   # (C1, Cm)
    b1_2d = b1.reshape(1, Cm).astype(jnp.float32)
    # tap t = ky*3 + kx -> rows [t*Cm, (t+1)*Cm) of the (9*Cm, C2) matrix
    w2 = jnp.transpose(w2_pt, (2, 3, 1, 0)).reshape(9 * Cm, C2).astype(jnp.bfloat16)
    b2_2d = b2.reshape(1, C2).astype(jnp.float32)

    in_specs = [
        pl.BlockSpec((1, H, W, C1), lambda n: (n, 0, 0, 0)),   # x, one image
        pl.BlockSpec((C1, Cm), lambda n: (0, 0)),              # w1
        pl.BlockSpec((1, Cm), lambda n: (0, 0)),               # b1
        pl.BlockSpec((9 * Cm, C2), lambda n: (0, 0)),          # w2 (im2col layout)
        pl.BlockSpec((1, C2), lambda n: (0, 0)),               # b2
    ]
    args = [x_nhwc, w1, b1_2d, w2, b2_2d]
    if add:
        # gain / beta folded into one scalar, passed through SMEM.
        gob = jnp.reshape(gain.astype(jnp.float32) / BETA, (1, 1))
        in_specs.append(pl.BlockSpec(memory_space=pltpu.MemorySpace.SMEM))
        args.append(gob)

    return pl.pallas_call(
        functools.partial(_bottleneck_kernel, add=add, H=H, W=W),
        out_shape=jax.ShapeDtypeStruct((N, H, W, C2), jnp.float32),
        grid_spec=pltpu.PrefetchScalarGridSpec(
            num_scalar_prefetch=0,
            grid=(N,),
            in_specs=in_specs,
            out_specs=pl.BlockSpec((1, H, W, C2), lambda n: (n, 0, 0, 0)),
            scratch_shapes=[
                pltpu.VMEM((H + 2, W + 2, Cm), jnp.float32),    # zero-bordered cv1 out
                pltpu.VMEM((H, W, 9 * Cm), jnp.bfloat16),       # im2col slab
            ],
        ),
        compiler_params=pltpu.CompilerParams(
            dimension_semantics=("parallel",),
            vmem_limit_bytes=32 * 1024 * 1024,
        ),
    )(*args)


# -------------------------------- reference --------------------------------- #

def reference_forward(x_nhwc, w1_pt, b1, w2_pt, b2, gain, *, add=True):
    dn = ('NHWC', 'HWIO', 'NHWC')
    y1 = jax.lax.conv_general_dilated(
        x_nhwc, jnp.transpose(w1_pt, (2, 3, 1, 0)), (1, 1), 'SAME',
        dimension_numbers=dn) + b1
    y1 = y1 * jax.nn.sigmoid(y1)
    y2 = jax.lax.conv_general_dilated(
        y1, jnp.transpose(w2_pt, (2, 3, 1, 0)), (1, 1), 'SAME',
        dimension_numbers=dn) + b2
    y2 = y2 * jax.nn.sigmoid(y2)
    return ALPHA * x_nhwc + y2 * gain / BETA if add else y2


# ----------------------------------- main ------------------------------------ #

if __name__ == "__main__":
    key = jax.random.PRNGKey(0)
    k_x, k_w1, k_b1, k_w2, k_b2 = jax.random.split(key, 5)

    N, H, W = 2, 16, 16
    C1 = C2 = 8          # in/out channels (add=True requires c1 == c2)
    Cm = 4               # hidden channels (e = 0.5)

    # PyTorch-style NCHW input, converted to NHWC for the kernel.
    x_nchw = jax.random.normal(k_x, (N, C1, H, W), dtype=jnp.float32)
    x_nhwc = jnp.transpose(x_nchw, (0, 2, 3, 1))

    # Deterministic parameters (PyTorch weight layouts).
    w1_pt = 0.1 * jax.random.normal(k_w1, (Cm, C1, 1, 1), dtype=jnp.float32)
    b1 = 0.1 * jax.random.normal(k_b1, (Cm,), dtype=jnp.float32)
    w2_pt = 0.1 * jax.random.normal(k_w2, (C2, Cm, 3, 3), dtype=jnp.float32)
    b2 = 0.1 * jax.random.normal(k_b2, (C2,), dtype=jnp.float32)
    gain = jnp.ones((), dtype=jnp.float32)     # nn.Parameter(torch.ones(()))

    # bf16 MXU operands with f32 accumulation -> compare with a bf16 tolerance.
    TOL = 5e-2

    out = bottleneck_forward(x_nhwc, w1_pt, b1, w2_pt, b2, gain, add=True)
    out = jax.block_until_ready(out)
    ref = reference_forward(x_nhwc, w1_pt, b1, w2_pt, b2, gain, add=True)
    assert out.shape == (N, H, W, C2)
    max_err = float(jnp.max(jnp.abs(out - ref)))
    assert jnp.allclose(out, ref, atol=TOL, rtol=TOL), f"add=True mismatch {max_err}"

    out_nr = bottleneck_forward(x_nhwc, w1_pt, b1, w2_pt, b2, gain, add=False)
    out_nr = jax.block_until_ready(out_nr)
    ref_nr = reference_forward(x_nhwc, w1_pt, b1, w2_pt, b2, gain, add=False)
    max_err_nr = float(jnp.max(jnp.abs(out_nr - ref_nr)))
    assert jnp.allclose(out_nr, ref_nr, atol=TOL, rtol=TOL), f"add=False mismatch {max_err_nr}"

    print("KERNEL_OK")
</pallas_src>

<mosaic_0001>
module attributes {stable_mosaic.version = 11 : i64} {
  func.func @_bottleneck_kernel(%arg0: i32, %arg1: memref<1x16x16x8xf32, #tpu.memory_space<vmem>>, %arg2: memref<8x4xbf16, #tpu.memory_space<vmem>>, %arg3: memref<1x4xf32, #tpu.memory_space<vmem>>, %arg4: memref<36x8xbf16, #tpu.memory_space<vmem>>, %arg5: memref<1x8xf32, #tpu.memory_space<vmem>>, %arg6: memref<1x1xf32, #tpu.memory_space<smem>>, %arg7: memref<1x16x16x8xf32, #tpu.memory_space<vmem>>, %arg8: memref<18x18x4xf32, #tpu.memory_space<vmem>>, %arg9: memref<16x16x36xbf16, #tpu.memory_space<vmem>>) attributes {dimension_semantics = [#tpu.dimension_semantics<parallel>], iteration_bounds = array<i64: 2>, scalar_prefetch = 0 : i64, scratch_operands = 2 : i64, tpu.core_type = #tpu.core_type<tc>, window_params = [{transform_indices = @transform_0, window_bounds = array<i64: 1, 16, 16, 8>}, {pipeline_mode = #tpu.pipeline_mode<synchronous>, transform_indices = @transform_1, window_bounds = array<i64: 8, 4>}, {pipeline_mode = #tpu.pipeline_mode<synchronous>, transform_indices = @transform_2, window_bounds = array<i64: 1, 4>}, {pipeline_mode = #tpu.pipeline_mode<synchronous>, transform_indices = @transform_3, window_bounds = array<i64: 36, 8>}, {pipeline_mode = #tpu.pipeline_mode<synchronous>, transform_indices = @transform_4, window_bounds = array<i64: 1, 8>}, {transform_indices = @transform_5, window_bounds = array<i64: 1, 1>}, {transform_indices = @transform_6, window_bounds = array<i64: 1, 16, 16, 8>}]} {
    %c0 = arith.constant 0 : index
    %c0_0 = arith.constant 0 : index
    %c0_1 = arith.constant 0 : index
    %c0_2 = arith.constant 0 : index
    %0 = vector.load %arg1[%c0, %c0_0, %c0_1, %c0_2] : memref<1x16x16x8xf32, #tpu.memory_space<vmem>>, vector<1x16x16x8xf32>
    %1 = vector.shape_cast %0 : vector<1x16x16x8xf32> to vector<16x16x8xf32>
    %2 = vector.shape_cast %1 : vector<16x16x8xf32> to vector<256x8xf32>
    %3 = arith.truncf %2 : vector<256x8xf32> to vector<256x8xbf16>
    %c0_3 = arith.constant 0 : index
    %c0_4 = arith.constant 0 : index
    %4 = vector.load %arg2[%c0_3, %c0_4] : memref<8x4xbf16, #tpu.memory_space<vmem>>, vector<8x4xbf16>
    %cst = arith.constant dense<0.000000e+00> : vector<256x4xf32>
    %5 = tpu.matmul %3, %4, %cst {dimension_numbers = #tpu.dot_dimension_numbers<[1], [0], [0], [1], [0, 0, 1, 1], [], []>} : vector<256x8xbf16>, vector<8x4xbf16>, vector<256x4xf32> -> vector<256x4xf32>
    %c0_5 = arith.constant 0 : index
    %c0_6 = arith.constant 0 : index
    %6 = vector.load %arg3[%c0_5, %c0_6] : memref<1x4xf32, #tpu.memory_space<vmem>>, vector<1x4xf32>
    %7 = vector.broadcast %6 : vector<1x4xf32> to vector<256x4xf32>
    %8 = arith.addf %5, %7 : vector<256x4xf32>
    %9 = arith.negf %8 : vector<256x4xf32>
    %10 = math.exp %9 : vector<256x4xf32>
    %cst_7 = arith.constant 1.000000e+00 : f32
    %11 = vector.broadcast %cst_7 : f32 to vector<256x4xf32>
    %12 = arith.addf %11, %10 : vector<256x4xf32>
    %13 = arith.divf %11, %12 : vector<256x4xf32>
    %14 = arith.mulf %8, %13 : vector<256x4xf32>
    %cst_8 = arith.constant 0.000000e+00 : f32
    %15 = vector.broadcast %cst_8 : f32 to vector<1x18x4xf32>
    %c0_9 = arith.constant 0 : index
    %c0_10 = arith.constant 0 : index
    %c0_11 = arith.constant 0 : index
    %16 = vector.load %arg8[%c0_9, %c0_10, %c0_11] : memref<18x18x4xf32, #tpu.memory_space<vmem>>, vector<1x18x4xf32>
    tpu.vector_store %arg8[%c0_9, %c0_10, %c0_11], %15 {strides = array<i32>} : memref<18x18x4xf32, #tpu.memory_space<vmem>>, vector<1x18x4xf32>,
    %cst_12 = arith.constant 0.000000e+00 : f32
    %17 = vector.broadcast %cst_12 : f32 to vector<1x18x4xf32>
    %c17 = arith.constant 17 : index
    %c0_13 = arith.constant 0 : index
    %c0_14 = arith.constant 0 : index
    %18 = vector.load %arg8[%c17, %c0_13, %c0_14] : memref<18x18x4xf32, #tpu.memory_space<vmem>>, vector<1x18x4xf32>
    tpu.vector_store %arg8[%c17, %c0_13, %c0_14], %17 {strides = array<i32>} : memref<18x18x4xf32, #tpu.memory_space<vmem>>, vector<1x18x4xf32>,
    %cst_15 = arith.constant 0.000000e+00 : f32
    %19 = vector.broadcast %cst_15 : f32 to vector<18x1x4xf32>
    %c0_16 = arith.constant 0 : index
    %c0_17 = arith.constant 0 : index
    %c0_18 = arith.constant 0 : index
    %20 = vector.load %arg8[%c0_16, %c0_17, %c0_18] : memref<18x18x4xf32, #tpu.memory_space<vmem>>, vector<18x1x4xf32>
    tpu.vector_store %arg8[%c0_16, %c0_17, %c0_18], %19 {strides = array<i32>} : memref<18x18x4xf32, #tpu.memory_space<vmem>>, vector<18x1x4xf32>,
    %cst_19 = arith.constant 0.000000e+00 : f32
    %21 = vector.broadcast %cst_19 : f32 to vector<18x1x4xf32>
    %c0_20 = arith.constant 0 : index
    %c17_21 = arith.constant 17 : index
    %c0_22 = arith.constant 0 : index
    %22 = vector.load %arg8[%c0_20, %c17_21, %c0_22] : memref<18x18x4xf32, #tpu.memory_space<vmem>>, vector<18x1x4xf32>
    tpu.vector_store %arg8[%c0_20, %c17_21, %c0_22], %21 {strides = array<i32>} : memref<18x18x4xf32, #tpu.memory_space<vmem>>, vector<18x1x4xf32>,
    %23 = vector.shape_cast %14 : vector<256x4xf32> to vector<16x16x4xf32>
    %c1 = arith.constant 1 : index
    %c1_23 = arith.constant 1 : index
    %c0_24 = arith.constant 0 : index
    %24 = vector.load %arg8[%c1, %c1_23, %c0_24] : memref<18x18x4xf32, #tpu.memory_space<vmem>>, vector<16x16x4xf32>
    tpu.vector_store %arg8[%c1, %c1_23, %c0_24], %23 {strides = array<i32>} : memref<18x18x4xf32, #tpu.memory_space<vmem>>, vector<16x16x4xf32>,
    %c0_25 = arith.constant 0 : index
    %c0_26 = arith.constant 0 : index
    %c0_27 = arith.constant 0 : index
    %25 = vector.load %arg8[%c0_25, %c0_26, %c0_27] : memref<18x18x4xf32, #tpu.memory_space<vmem>>, vector<16x16x4xf32>
    %26 = arith.truncf %25 : vector<16x16x4xf32> to vector<16x16x4xbf16>
    %c0_28 = arith.constant 0 : index
    %c0_29 = arith.constant 0 : index
    %c0_30 = arith.constant 0 : index
    %27 = vector.load %arg9[%c0_28, %c0_29, %c0_30] : memref<16x16x36xbf16, #tpu.memory_space<vmem>>, vector<16x16x4xbf16>
    tpu.vector_store %arg9[%c0_28, %c0_29, %c0_30], %26 {strides = array<i32>} : memref<16x16x36xbf16, #tpu.memory_space<vmem>>, vector<16x16x4xbf16>,
    %c0_31 = arith.constant 0 : index
    %c1_32 = arith.constant 1 : index
    %c0_33 = arith.constant 0 : index
    %28 = vector.load %arg8[%c0_31, %c1_32, %c0_33] : memref<18x18x4xf32, #tpu.memory_space<vmem>>, vector<16x16x4xf32>
    %29 = arith.truncf %28 : vector<16x16x4xf32> to vector<16x16x4xbf16>
    %c0_34 = arith.constant 0 : index
    %c0_35 = arith.constant 0 : index
    %c4 = arith.constant 4 : index
    %30 = vector.load %arg9[%c0_34, %c0_35, %c4] : memref<16x16x36xbf16, #tpu.memory_space<vmem>>, vector<16x16x4xbf16>
    tpu.vector_store %arg9[%c0_34, %c0_35, %c4], %29 {strides = array<i32>} : memref<16x16x36xbf16, #tpu.memory_space<vmem>>, vector<16x16x4xbf16>,
    %c0_36 = arith.constant 0 : index
    %c2 = arith.constant 2 : index
    %c0_37 = arith.constant 0 : index
    %31 = vector.load %arg8[%c0_36, %c2, %c0_37] : memref<18x18x4xf32, #tpu.memory_space<vmem>>, vector<16x16x4xf32>
    %32 = arith.truncf %31 : vector<16x16x4xf32> to vector<16x16x4xbf16>
    %c0_38 = arith.constant 0 : index
    %c0_39 = arith.constant 0 : index
    %c8 = arith.constant 8 : index
    %33 = vector.load %arg9[%c0_38, %c0_39, %c8] : memref<16x16x36xbf16, #tpu.memory_space<vmem>>, vector<16x16x4xbf16>
    tpu.vector_store %arg9[%c0_38, %c0_39, %c8], %32 {strides = array<i32>} : memref<16x16x36xbf16, #tpu.memory_space<vmem>>, vector<16x16x4xbf16>,
    %c1_40 = arith.constant 1 : index
    %c0_41 = arith.constant 0 : index
    %c0_42 = arith.constant 0 : index
    %34 = vector.load %arg8[%c1_40, %c0_41, %c0_42] : memref<18x18x4xf32, #tpu.memory_space<vmem>>, vector<16x16x4xf32>
    %35 = arith.truncf %34 : vector<16x16x4xf32> to vector<16x16x4xbf16>
    %c0_43 = arith.constant 0 : index
    %c0_44 = arith.constant 0 : index
    %c12 = arith.constant 12 : index
    %36 = vector.load %arg9[%c0_43, %c0_44, %c12] : memref<16x16x36xbf16, #tpu.memory_space<vmem>>, vector<16x16x4xbf16>
    tpu.vector_store %arg9[%c0_43, %c0_44, %c12], %35 {strides = array<i32>} : memref<16x16x36xbf16, #tpu.memory_space<vmem>>, vector<16x16x4xbf16>,
    %c1_45 = arith.constant 1 : index
    %c1_46 = arith.constant 1 : index
    %c0_47 = arith.constant 0 : index
    %37 = vector.load %arg8[%c1_45, %c1_46, %c0_47] : memref<18x18x4xf32, #tpu.memory_space<vmem>>, vector<16x16x4xf32>
    %38 = arith.truncf %37 : vector<16x16x4xf32> to vector<16x16x4xbf16>
    %c0_48 = arith.constant 0 : index
    %c0_49 = arith.constant 0 : index
    %c16 = arith.constant 16 : index
    %39 = vector.load %arg9[%c0_48, %c0_49, %c16] : memref<16x16x36xbf16, #tpu.memory_space<vmem>>, vector<16x16x4xbf16>
    tpu.vector_store %arg9[%c0_48, %c0_49, %c16], %38 {strides = array<i32>} : memref<16x16x36xbf16, #tpu.memory_space<vmem>>, vector<16x16x4xbf16>,
    %c1_50 = arith.constant 1 : index
    %c2_51 = arith.constant 2 : index
    %c0_52 = arith.constant 0 : index
    %40 = vector.load %arg8[%c1_50, %c2_51, %c0_52] : memref<18x18x4xf32, #tpu.memory_space<vmem>>, vector<16x16x4xf32>
    %41 = arith.truncf %40 : vector<16x16x4xf32> to vector<16x16x4xbf16>
    %c0_53 = arith.constant 0 : index
    %c0_54 = arith.constant 0 : index
    %c20 = arith.constant 20 : index
    %42 = vector.load %arg9[%c0_53, %c0_54, %c20] : memref<16x16x36xbf16, #tpu.memory_space<vmem>>, vector<16x16x4xbf16>
    tpu.vector_store %arg9[%c0_53, %c0_54, %c20], %41 {strides = array<i32>} : memref<16x16x36xbf16, #tpu.memory_space<vmem>>, vector<16x16x4xbf16>,
    %c2_55 = arith.constant 2 : index
    %c0_56 = arith.constant 0 : index
    %c0_57 = arith.constant 0 : index
    %43 = vector.load %arg8[%c2_55, %c0_56, %c0_57] : memref<18x18x4xf32, #tpu.memory_space<vmem>>, vector<16x16x4xf32>
    %44 = arith.truncf %43 : vector<16x16x4xf32> to vector<16x16x4xbf16>
    %c0_58 = arith.constant 0 : index
    %c0_59 = arith.constant 0 : index
    %c24 = arith.constant 24 : index
    %45 = vector.load %arg9[%c0_58, %c0_59, %c24] : memref<16x16x36xbf16, #tpu.memory_space<vmem>>, vector<16x16x4xbf16>
    tpu.vector_store %arg9[%c0_58, %c0_59, %c24], %44 {strides = array<i32>} : memref<16x16x36xbf16, #tpu.memory_space<vmem>>, vector<16x16x4xbf16>,
    %c2_60 = arith.constant 2 : index
    %c1_61 = arith.constant 1 : index
    %c0_62 = arith.constant 0 : index
    %46 = vector.load %arg8[%c2_60, %c1_61, %c0_62] : memref<18x18x4xf32, #tpu.memory_space<vmem>>, vector<16x16x4xf32>
    %47 = arith.truncf %46 : vector<16x16x4xf32> to vector<16x16x4xbf16>
    %c0_63 = arith.constant 0 : index
    %c0_64 = arith.constant 0 : index
    %c28 = arith.constant 28 : index
    %48 = vector.load %arg9[%c0_63, %c0_64, %c28] : memref<16x16x36xbf16, #tpu.memory_space<vmem>>, vector<16x16x4xbf16>
    tpu.vector_store %arg9[%c0_63, %c0_64, %c28], %47 {strides = array<i32>} : memref<16x16x36xbf16, #tpu.memory_space<vmem>>, vector<16x16x4xbf16>,
    %c2_65 = arith.constant 2 : index
    %c2_66 = arith.constant 2 : index
    %c0_67 = arith.constant 0 : index
    %49 = vector.load %arg8[%c2_65, %c2_66, %c0_67] : memref<18x18x4xf32, #tpu.memory_space<vmem>>, vector<16x16x4xf32>
    %50 = arith.truncf %49 : vector<16x16x4xf32> to vector<16x16x4xbf16>
    %c0_68 = arith.constant 0 : index
    %c0_69 = arith.constant 0 : index
    %c32 = arith.constant 32 : index
    %51 = vector.load %arg9[%c0_68, %c0_69, %c32] : memref<16x16x36xbf16, #tpu.memory_space<vmem>>, vector<16x16x4xbf16>
    tpu.vector_store %arg9[%c0_68, %c0_69, %c32], %50 {strides = array<i32>} : memref<16x16x36xbf16, #tpu.memory_space<vmem>>, vector<16x16x4xbf16>,
    %c0_70 = arith.constant 0 : index
    %c0_71 = arith.constant 0 : index
    %c0_72 = arith.constant 0 : index
    %52 = vector.load %arg9[%c0_70, %c0_71, %c0_72] : memref<16x16x36xbf16, #tpu.memory_space<vmem>>, vector<16x16x36xbf16>
    %53 = vector.shape_cast %52 : vector<16x16x36xbf16> to vector<256x36xbf16>
    %c0_73 = arith.constant 0 : index
    %c0_74 = arith.constant 0 : index
    %54 = vector.load %arg4[%c0_73, %c0_74] : memref<36x8xbf16, #tpu.memory_space<vmem>>, vector<36x8xbf16>
    %cst_75 = arith.constant dense<0.000000e+00> : vector<256x8xf32>
    %55 = tpu.matmul %53, %54, %cst_75 {dimension_numbers = #tpu.dot_dimension_numbers<[1], [0], [0], [1], [0, 0, 1, 1], [], []>} : vector<256x36xbf16>, vector<36x8xbf16>, vector<256x8xf32> -> vector<256x8xf32>
    %c0_76 = arith.constant 0 : index
    %c0_77 = arith.constant 0 : index
    %56 = vector.load %arg5[%c0_76, %c0_77] : memref<1x8xf32, #tpu.memory_space<vmem>>, vector<1x8xf32>
    %57 = vector.broadcast %56 : vector<1x8xf32> to vector<256x8xf32>
    %58 = arith.addf %55, %57 : vector<256x8xf32>
    %59 = arith.negf %58 : vector<256x8xf32>
    %60 = math.exp %59 : vector<256x8xf32>
    %cst_78 = arith.constant 1.000000e+00 : f32
    %61 = vector.broadcast %cst_78 : f32 to vector<256x8xf32>
    %62 = arith.addf %61, %60 : vector<256x8xf32>
    %63 = arith.divf %61, %62 : vector<256x8xf32>
    %64 = arith.mulf %58, %63 : vector<256x8xf32>
    %cst_79 = arith.constant 2.000000e-01 : f32
    %65 = vector.broadcast %cst_79 : f32 to vector<256x8xf32>
    %66 = arith.mulf %65, %2 : vector<256x8xf32>
    %c0_80 = arith.constant 0 : index
    %c0_81 = arith.constant 0 : index
    %67 = memref.load %arg6[%c0_80, %c0_81] : memref<1x1xf32, #tpu.memory_space<smem>>
    %68 = vector.broadcast %67 : f32 to vector<256x8xf32>
    %69 = arith.mulf %64, %68 : vector<256x8xf32>
    %70 = arith.addf %66, %69 : vector<256x8xf32>
    %71 = vector.shape_cast %70 : vector<256x8xf32> to vector<16x16x8xf32>
    %c0_82 = arith.constant 0 : index
    %c0_83 = arith.constant 0 : index
    %c0_84 = arith.constant 0 : index
    %c0_85 = arith.constant 0 : index
    %72 = vector.load %arg7[%c0_82, %c0_83, %c0_84, %c0_85] : memref<1x16x16x8xf32, #tpu.memory_space<vmem>>, vector<1x16x16x8xf32>
    %73 = vector.shape_cast %72 : vector<1x16x16x8xf32> to vector<16x16x8xf32>
    %74 = vector.shape_cast %71 : vector<16x16x8xf32> to vector<1x16x16x8xf32>
    tpu.vector_store %arg7[%c0_82, %c0_83, %c0_84, %c0_85], %74 {strides = array<i32>} : memref<1x16x16x8xf32, #tpu.memory_space<vmem>>, vector<1x16x16x8xf32>,
    return
  }
  func.func @transform_0(%arg0: i32) -> (i32, i32, i32, i32) {
    %c0_i32 = arith.constant 0 : i32
    %c0_i32_0 = arith.constant 0 : i32
    %c0_i32_1 = arith.constant 0 : i32
    %c0_i32_2 = arith.constant 0 : i32
    return %arg0, %c0_i32, %c0_i32_0, %c0_i32_1 : i32, i32, i32, i32
  }
  func.func @transform_1(%arg0: i32) -> (i32, i32) {
    %c0_i32 = arith.constant 0 : i32
    %c0_i32_0 = arith.constant 0 : i32
    %c0_i32_1 = arith.constant 0 : i32
    return %c0_i32, %c0_i32_0 : i32, i32
  }
  func.func @transform_2(%arg0: i32) -> (i32, i32) {
    %c0_i32 = arith.constant 0 : i32
    %c0_i32_0 = arith.constant 0 : i32
    %c0_i32_1 = arith.constant 0 : i32
    return %c0_i32, %c0_i32_0 : i32, i32
  }
  func.func @transform_3(%arg0: i32) -> (i32, i32) {
    %c0_i32 = arith.constant 0 : i32
    %c0_i32_0 = arith.constant 0 : i32
    %c0_i32_1 = arith.constant 0 : i32
    return %c0_i32, %c0_i32_0 : i32, i32
  }
  func.func @transform_4(%arg0: i32) -> (i32, i32) {
    %c0_i32 = arith.constant 0 : i32
    %c0_i32_0 = arith.constant 0 : i32
    %c0_i32_1 = arith.constant 0 : i32
    return %c0_i32, %c0_i32_0 : i32, i32
  }
  func.func @transform_5(%arg0: i32) -> (i32, i32) {
    %c0_i32 = arith.constant 0 : i32
    %c0_i32_0 = arith.constant 0 : i32
    %c0_i32_1 = arith.constant 0 : i32
    return %c0_i32, %c0_i32_0 : i32, i32
  }
  func.func @transform_6(%arg0: i32) -> (i32, i32, i32, i32) {
    %c0_i32 = arith.constant 0 : i32
    %c0_i32_0 = arith.constant 0 : i32
    %c0_i32_1 = arith.constant 0 : i32
    %c0_i32_2 = arith.constant 0 : i32
    return %arg0, %c0_i32, %c0_i32_0, %c0_i32_1 : i32, i32, i32, i32
  }
}

</mosaic_0001>

<llo_original>
// kernel: tpu_custom_call.1
$region0: #{tpu_custom_call.1}
  #allocation0 [shape = 'u32[]', space=smem, size = 0x4, offset = 0x4, fixed_abs, tag = 'smem constant byte address 0x4 - core index']
  #allocation1 [shape = 'u32[144,128]{1,0:T(1,128)}', space=vmem, size = 0x12000, scoped, tag = 'internal scratch']
  #allocation2 [shape = 'f32[18,18,4]{2,1,0:T(8,128)}', space=vmem, size = 0x36000, scoped, tag = 'scratch operand']
  #allocation3 [shape = 'bf16[16,16,36]{2,1,0:T(16,128)(2,1)}', space=vmem, size = 0x10000, scoped, tag = 'scratch operand']
  #allocation4 [shape = 'f32[1,1]{1,0:T(1,128)S(6)}', space=smem, size = 0x200, scoped, tag = 'scoped memory for tpu_custom_call.1']
  %s0 = inlined_call_operand.vmem [shape: f32[2,16,16,8], index: 0, kind: input, shape index: {}]
  %s1 = inlined_call_operand.vmem [shape: bf16[8,4], index: 1, kind: input, shape index: {}]
  %s2 = inlined_call_operand.vmem [shape: f32[1,4], index: 2, kind: input, shape index: {}]
  %s3 = inlined_call_operand.vmem [shape: bf16[36,8], index: 3, kind: input, shape index: {}]
  %s4 = inlined_call_operand.vmem [shape: f32[1,8], index: 4, kind: input, shape index: {}]
  %s5 = inlined_call_operand.<no memory space> [shape: f32[1,1], index: 5, kind: input, shape index: {}]
  %s6 = inlined_call_operand.vmem [shape: f32[2,16,16,8], index: 6, kind: output, shape index: {}]
  %s7 = sld [smem:[#allocation0]]
  $region57: #{tpu_custom_call.1} parent=0
    _
  %s9 = ssub.s32 1, %s7
  %s10 = scalar_select 0, %s9, %s7
  %11 = sst [smem:[#allocation4]] %s5
  loop: start=0, step=1, limit=4
  $region2: #{tpu_custom_call.1} parent=0 // loop_pre_header
    _
  $region3: #{tpu_custom_call.1} parent=0 // loop_header
    %s13 = sphi 0, %s17
    %p14 = scmp.ge.s32.totalorder %s13, 4
    %s23 = sphi 0, %s25
    %s26 = sphi 0, %s23
    %s27 = sphi 0, %s26
    %s43 = sphi 0, %s27
    %s47 = sphi 0, %s47
    %s49 = sphi 0, %s47
    %s50 = sphi 0, %s49
    %s64 = sphi 0, %s50
    %s68 = sphi 0, %s68
    %s70 = sphi 0, %s68
    %s71 = sphi 0, %s70
    %s85 = sphi 0, %s71
    %s89 = sphi 0, %s89
    %s91 = sphi 0, %s89
    %s92 = sphi 0, %s91
    %s106 = sphi 0, %s92
    %s110 = sphi 0, %s110
    %s112 = sphi 0, %s110
    %s113 = sphi 0, %s112
    %s127 = sphi 0, %s113
    %s131 = sphi 0, %s131
    %s133 = sphi 0, %s131
    %s134 = sphi 0, %s133
    %s148 = sphi 0, %s134
    %s154 = sphi 0, %s156
    %s157 = sphi 0, %s154
    %s158 = sphi 0, %s157
    %s174 = sphi 0, %s158
  $region4: #{tpu_custom_call.1} parent=0 // loop_header_branch
    %16 = sbr.rel (%p14) target = $region8
  $region5: #{tpu_custom_call.1} parent=0 // loop_body
    %s18 = ssub.s32 %s13, 1
    %s19 = ssub.s32 %s13, 2
    %s20 = sadd.s32 %s13, 1
    %s21 = ssub.s32 %s13, %s20
    %p22 = scmp.eq.s32.totalorder %s21, 0
    %s24 = sadd.s32 %s23, 1
    %s25 = scalar_select %p22, %s23, %s24
    %p28 = pneg %p22
    %p29 = scmp.eq.s32.totalorder %s13, 1
    %p30 = por %p28, %p29
    %p31 = scmp.ne.s32.totalorder %s23, %s26
    %p32 = scmp.eq.s32.totalorder %s13, 0
    %p33 = por %p31, %p32
    %p34 = scmp.ne.s32.totalorder %s23, %s26
    %p35 = scmp.eq.s32.totalorder %s18, 1
    %p36 = por %p34, %p35
    %p37 = scmp.ne.s32.totalorder %s26, %s27
    %p38 = scmp.eq.s32.totalorder %s18, 0
    %p39 = por %p37, %p38
    %p40 = scmp.ne.s32.totalorder %s26, %s27
    %p41 = scmp.eq.s32.totalorder %s19, 1
    %p42 = por %p40, %p41
    %p44 = scmp.ne.s32.totalorder %s27, %s43
    %p45 = scmp.eq.s32.totalorder %s19, 0
    %p46 = por %p44, %p45
    %s48 = sadd.s32 %s47, 1
    %p51 = scmp.eq.s32.totalorder %s13, 1
    %p52 = scmp.ne.s32.totalorder %s47, %s49
    %p53 = scmp.eq.s32.totalorder %s13, 0
    %p54 = por %p52, %p53
    %p55 = scmp.ne.s32.totalorder %s47, %s49
    %p56 = scmp.eq.s32.totalorder %s18, 1
    %p57 = por %p55, %p56
    %p58 = scmp.ne.s32.totalorder %s49, %s50
    %p59 = scmp.eq.s32.totalorder %s18, 0
    %p60 = por %p58, %p59
    %p61 = scmp.ne.s32.totalorder %s49, %s50
    %p62 = scmp.eq.s32.totalorder %s19, 1
    %p63 = por %p61, %p62
    %p65 = scmp.ne.s32.totalorder %s50, %s64
    %p66 = scmp.eq.s32.totalorder %s19, 0
    %p67 = por %p65, %p66
    %s69 = sadd.s32 %s68, 1
    %p72 = scmp.eq.s32.totalorder %s13, 1
    %p73 = scmp.ne.s32.totalorder %s68, %s70
    %p74 = scmp.eq.s32.totalorder %s13, 0
    %p75 = por %p73, %p74
    %p76 = scmp.ne.s32.totalorder %s68, %s70
    %p77 = scmp.eq.s32.totalorder %s18, 1
    %p78 = por %p76, %p77
    %p79 = scmp.ne.s32.totalorder %s70, %s71
    %p80 = scmp.eq.s32.totalorder %s18, 0
    %p81 = por %p79, %p80
    %p82 = scmp.ne.s32.totalorder %s70, %s71
    %p83 = scmp.eq.s32.totalorder %s19, 1
    %p84 = por %p82, %p83
    %p86 = scmp.ne.s32.totalorder %s71, %s85
    %p87 = scmp.eq.s32.totalorder %s19, 0
    %p88 = por %p86, %p87
    %s90 = sadd.s32 %s89, 1
    %p93 = scmp.eq.s32.totalorder %s13, 1
    %p94 = scmp.ne.s32.totalorder %s89, %s91
    %p95 = scmp.eq.s32.totalorder %s13, 0
    %p96 = por %p94, %p95
    %p97 = scmp.ne.s32.totalorder %s89, %s91
    %p98 = scmp.eq.s32.totalorder %s18, 1
    %p99 = por %p97, %p98
    %p100 = scmp.ne.s32.totalorder %s91, %s92
    %p101 = scmp.eq.s32.totalorder %s18, 0
    %p102 = por %p100, %p101
    %p103 = scmp.ne.s32.totalorder %s91, %s92
    %p104 = scmp.eq.s32.totalorder %s19, 1
    %p105 = por %p103, %p104
    %p107 = scmp.ne.s32.totalorder %s92, %s106
    %p108 = scmp.eq.s32.totalorder %s19, 0
    %p109 = por %p107, %p108
    %s111 = sadd.s32 %s110, 1
    %p114 = scmp.eq.s32.totalorder %s13, 1
    %p115 = scmp.ne.s32.totalorder %s110, %s112
    %p116 = scmp.eq.s32.totalorder %s13, 0
    %p117 = por %p115, %p116
    %p118 = scmp.ne.s32.totalorder %s110, %s112
    %p119 = scmp.eq.s32.totalorder %s18, 1
    %p120 = por %p118, %p119
    %p121 = scmp.ne.s32.totalorder %s112, %s113
    %p122 = scmp.eq.s32.totalorder %s18, 0
    %p123 = por %p121, %p122
    %p124 = scmp.ne.s32.totalorder %s112, %s113
    %p125 = scmp.eq.s32.totalorder %s19, 1
    %p126 = por %p124, %p125
    %p128 = scmp.ne.s32.totalorder %s113, %s127
    %p129 = scmp.eq.s32.totalorder %s19, 0
    %p130 = por %p128, %p129
    %s132 = sadd.s32 %s131, 1
    %p135 = scmp.eq.s32.totalorder %s13, 1
    %p136 = scmp.ne.s32.totalorder %s131, %s133
    %p137 = scmp.eq.s32.totalorder %s13, 0
    %p138 = por %p136, %p137
    %p139 = scmp.ne.s32.totalorder %s131, %s133
    %p140 = scmp.eq.s32.totalorder %s18, 1
    %p141 = por %p139, %p140
    %p142 = scmp.ne.s32.totalorder %s133, %s134
    %p143 = scmp.eq.s32.totalorder %s18, 0
    %p144 = por %p142, %p143
    %p145 = scmp.ne.s32.totalorder %s133, %s134
    %p146 = scmp.eq.s32.totalorder %s19, 1
    %p147 = por %p145, %p146
    %p149 = scmp.ne.s32.totalorder %s134, %s148
    %p150 = scmp.eq.s32.totalorder %s19, 0
    %p151 = por %p149, %p150
    %s152 = ssub.s32 %s13, %s20
    %p153 = scmp.eq.s32.totalorder %s152, 0
    %s155 = sadd.s32 %s154, 1
    %s156 = scalar_select %p153, %s154, %s155
    %p159 = pneg %p153
    %p160 = scmp.eq.s32.totalorder %s13, 1
    %p161 = por %p159, %p160
    %p162 = scmp.ne.s32.totalorder %s154, %s157
    %p163 = scmp.eq.s32.totalorder %s13, 0
    %p164 = por %p162, %p163
    %p165 = scmp.ne.s32.totalorder %s154, %s157
    %p166 = scmp.eq.s32.totalorder %s18, 1
    %p167 = por %p165, %p166
    %p168 = scmp.ne.s32.totalorder %s157, %s158
    %p169 = scmp.eq.s32.totalorder %s18, 0
    %p170 = por %p168, %p169
    %p171 = scmp.ne.s32.totalorder %s157, %s158
    %p172 = scmp.eq.s32.totalorder %s19, 1
    %p173 = por %p171, %p172
    %p175 = scmp.ne.s32.totalorder %s158, %s174
    %p176 = scmp.eq.s32.totalorder %s19, 0
    %p177 = por %p175, %p176
    %p178 = scmp.le.s32.totalorder 1, %s13
    %p179 = scmp.lt.s32.totalorder %s13, 3
    %p180 = pnand %p178, %p179
    %p181 = pneg %p180
    // Predicated region
    $region9: #{tpu_custom_call.1} parent=5 // pred_check
      _
    $region10: #{tpu_custom_call.1} parent=5 // pred_check_branch
      %183 = sbr.rel (%p180) target = $region12
    $region11: #{tpu_custom_call.1} parent=5 // pred_region
      %s184 = ssub.s32 %s13, 1
      // Predicated region
      $region13: #{tpu_custom_call.1} parent=11 // pred_check
        %p185 = pneg %p60
      $region14: #{tpu_custom_call.1} parent=11 // pred_check_branch
        %187 = sbr.rel (%p185) target = $region16
      $region15: #{tpu_custom_call.1} parent=11 // pred_region
        _
      $region16: #{tpu_custom_call.1} parent=11 // pred_fallthru
        _
      // Predicated region
      $region17: #{tpu_custom_call.1} parent=11 // pred_check
        %p188 = pneg %p81
      $region18: #{tpu_custom_call.1} parent=11 // pred_check_branch
        %190 = sbr.rel (%p188) target = $region20
      $region19: #{tpu_custom_call.1} parent=11 // pred_region
        _
      $region20: #{tpu_custom_call.1} parent=11 // pred_fallthru
        _
      // Predicated region
      $region21: #{tpu_custom_call.1} parent=11 // pred_check
        %p191 = pneg %p102
      $region22: #{tpu_custom_call.1} parent=11 // pred_check_branch
        %193 = sbr.rel (%p191) target = $region24
      $region23: #{tpu_custom_call.1} parent=11 // pred_region
        _
      $region24: #{tpu_custom_call.1} parent=11 // pred_fallthru
        _
      // Predicated region
      $region25: #{tpu_custom_call.1} parent=11 // pred_check
        %p194 = pneg %p123
      $region26: #{tpu_custom_call.1} parent=11 // pred_check_branch
        %196 = sbr.rel (%p194) target = $region28
      $region27: #{tpu_custom_call.1} parent=11 // pred_region
        _
      $region28: #{tpu_custom_call.1} parent=11 // pred_fallthru
        _
      // Predicated region
      $region29: #{tpu_custom_call.1} parent=11 // pred_check
        %p197 = pneg %p144
      $region30: #{tpu_custom_call.1} parent=11 // pred_check_branch
        %199 = sbr.rel (%p197) target = $region32
      $region31: #{tpu_custom_call.1} parent=11 // pred_region
        _
      $region32: #{tpu_custom_call.1} parent=11 // pred_fallthru
        _
    $region12: #{tpu_custom_call.1} parent=5 // pred_fallthru
      _
    %p200 = scmp.lt.s32.totalorder %s13, 2
    // Predicated region
    $region33: #{tpu_custom_call.1} parent=5 // pred_check
      %p201 = pneg %p200
    $region34: #{tpu_custom_call.1} parent=5 // pred_check_branch
      %203 = sbr.rel (%p201) target = $region36
    $region35: #{tpu_custom_call.1} parent=5 // pred_region
      // Predicated region
      $region37: #{tpu_custom_call.1} parent=35 // pred_check
        %p204 = pneg %p33
      $region38: #{tpu_custom_call.1} parent=35 // pred_check_branch
        %206 = sbr.rel (%p204) target = $region40
      $region39: #{tpu_custom_call.1} parent=35 // pred_region
        %p207 = scmp.lt.s32.totalorder %s13, 1
        %s208 = scalar_select %p207, %s13, 1
        %s209 = smul.addr %s208, 32
        %s210 = smul.addr %s209, 8
        %s211 = scalar_lea.vmem %s0, %s210
      $region40: #{tpu_custom_call.1} parent=35 // pred_fallthru
        _
    $region36: #{tpu_custom_call.1} parent=5 // pred_fallthru
      _
    %p212 = scmp.le.s32.totalorder 1, %s13
    %p213 = scmp.lt.s32.totalorder %s13, 3
    %p214 = pnand %p212, %p213
    %p215 = pneg %p214
    // Predicated region
    $region41: #{tpu_custom_call.1} parent=5 // pred_check
      _
    $region42: #{tpu_custom_call.1} parent=5 // pred_check_branch
      %217 = sbr.rel (%p214) target = $region44
    $region43: #{tpu_custom_call.1} parent=5 // pred_region
      %s218 = ssub.s32 %s13, 1
      %p219 = scmp.lt.s32.totalorder %s18, 1
      %s220 = scalar_select %p219, %s18, 1
      %s221 = smul.addr %s220, 32
      %s222 = smul.addr %s221, 8
      %s223 = scalar_lea.vmem %s0, %s222
      %p224 = pneg %p39
      %p225 = pneg %p36
      %p226 = pneg %p60
      %p227 = pneg %p57
      %p228 = pneg %p81
      %p229 = pneg %p78
      %p230 = pneg %p102
      %p231 = pneg %p99
      %p232 = pneg %p123
      %p233 = pneg %p120
      %p234 = pneg %p144
      %p235 = pneg %p141
      %p236 = pneg %p170
      %p237 = pneg %p167
      %p238 = scmp.lt.s32.totalorder %s18, 1
      %s239 = scalar_select %p238, %s18, 1
      %s240 = smul.addr %s239, 32
      %s241 = smul.addr %s240, 8
      %s242 = scalar_lea.vmem %s6, %s241
      %p243 = scmp.lt.s32.totalorder %s18, 1
      %s244 = scalar_select %p243, %s18, 1
      %s245 = smul.addr %s244, 32
      %s246 = smul.addr %s245, 8
      %s247 = scalar_lea.vmem %s0, %s246
      %p248 = scmp.lt.s32.totalorder %s18, 1
      %s249 = scalar_select %p248, %s18, 1
      %s250 = smul.addr %s249, 32
      %s251 = smul.addr %s250, 8
      %s252 = scalar_lea.vmem %s6, %s251
      %v254 = vld [vmem:[%s247] sm:$0xff]
      %v255 = vld [vmem:[%s247 + $0x8] sm:$0xff]
      %v256 = vld [vmem:[%s247 + $0x10] sm:$0xff]
      %v257 = vld [vmem:[%s247 + $0x18] sm:$0xff]
      %v258 = vld [vmem:[%s247 + $0x20] sm:$0xff]
      %v259 = vld [vmem:[%s247 + $0x28] sm:$0xff]
      %v260 = vld [vmem:[%s247 + $0x30] sm:$0xff]
      %v261 = vld [vmem:[%s247 + $0x38] sm:$0xff]
      %v262 = vld [vmem:[%s247 + $0x40] sm:$0xff]
      %v263 = vld [vmem:[%s247 + $0x48] sm:$0xff]
      %v264 = vld [vmem:[%s247 + $0x50] sm:$0xff]
      %v265 = vld [vmem:[%s247 + $0x58] sm:$0xff]
      %v266 = vld [vmem:[%s247 + $0x60] sm:$0xff]
      %v267 = vld [vmem:[%s247 + $0x68] sm:$0xff]
      %v268 = vld [vmem:[%s247 + $0x70] sm:$0xff]
      %v269 = vld [vmem:[%s247 + $0x78] sm:$0xff]
      %v270 = vld [vmem:[%s247 + $0x80] sm:$0xff]
      %v271 = vld [vmem:[%s247 + $0x88] sm:$0xff]
      %v272 = vld [vmem:[%s247 + $0x90] sm:$0xff]
      %v273 = vld [vmem:[%s247 + $0x98] sm:$0xff]
      %v274 = vld [vmem:[%s247 + $0xa0] sm:$0xff]
      %v275 = vld [vmem:[%s247 + $0xa8] sm:$0xff]
      %v276 = vld [vmem:[%s247 + $0xb0] sm:$0xff]
      %v277 = vld [vmem:[%s247 + $0xb8] sm:$0xff]
      %v278 = vld [vmem:[%s247 + $0xc0] sm:$0xff]
      %v279 = vld [vmem:[%s247 + $0xc8] sm:$0xff]
      %v280 = vld [vmem:[%s247 + $0xd0] sm:$0xff]
      %v281 = vld [vmem:[%s247 + $0xd8] sm:$0xff]
      %v282 = vld [vmem:[%s247 + $0xe0] sm:$0xff]
      %v283 = vld [vmem:[%s247 + $0xe8] sm:$0xff]
      %v284 = vld [vmem:[%s247 + $0xf0] sm:$0xff]
      %v285 = vld [vmem:[%s247 + $0xf8] sm:$0xff]
      %v286 = vpack.c.bf16 %v255, %v254
      %v287 = vpack.c.bf16 %v257, %v256
      %v288 = vpack.c.bf16 %v259, %v258
      %v289 = vpack.c.bf16 %v261, %v260
      %v290 = vpack.c.bf16 %v263, %v262
      %v291 = vpack.c.bf16 %v265, %v264
      %v292 = vpack.c.bf16 %v267, %v266
      %v293 = vpack.c.bf16 %v269, %v268
      %v294 = vpack.c.bf16 %v271, %v270
      %v295 = vpack.c.bf16 %v273, %v272
      %v296 = vpack.c.bf16 %v275, %v274
      %v297 = vpack.c.bf16 %v277, %v276
      %v298 = vpack.c.bf16 %v279, %v278
      %v299 = vpack.c.bf16 %v281, %v280
      %v300 = vpack.c.bf16 %v283, %v282
      %v301 = vpack.c.bf16 %v285, %v284
      %v302 = vld [vmem:[%s1] sm:$0xf]
      %v303 = vld [vmem:[%s2] sm:$0x1]
      %v305 = vlaneseq
      %v306 = vshrl.u32 %v305, 7
      %v307 = vsub.s32 0, %v306
      %v308 = vrot.slane %v303, %v307
      %vm310 = vcmask 64512
      %v312 = vsel %vm310, %v286, 0
      %v315 = vsel %vm310, %v287, 0
      %v318 = vsel %vm310, %v288, 0
      %v321 = vsel %vm310, %v289, 0
      %v324 = vsel %vm310, %v290, 0
      %v327 = vsel %vm310, %v291, 0
      %v330 = vsel %vm310, %v292, 0
      %v333 = vsel %vm310, %v293, 0
      %v336 = vsel %vm310, %v294, 0
      %v339 = vsel %vm310, %v295, 0
      %v342 = vsel %vm310, %v296, 0
      %v345 = vsel %vm310, %v297, 0
      %v348 = vsel %vm310, %v298, 0
      %v351 = vsel %vm310, %v299, 0
      %v354 = vsel %vm310, %v300, 0
      %v357 = vsel %vm310, %v301, 0
      %vm359 = vcmask 1043456
      %v361 = vsel %vm359, %v302, 0
      %363 = vmatprep.subr.bf16.mxu0 0
      %364 = vmatpush1.bf16.msra.mxu0 %v361
      %365 = vmatprep.subr.bf16.mxu0 0
      %366 = vmatpush1.bf16.msra.mxu0 0
      %367 = vmatprep.subr.bf16.mxu0 0
      %368 = vmatpush1.bf16.msra.mxu0 0
      %369 = vmatprep.subr.bf16.mxu0 0
      %370 = vmatpush1.bf16.msra.mxu0 0
      %371 = vmatprep.subr.bf16.mxu0 0
      %372 = vmatpush1.bf16.msra.mxu0 0
      %373 = vmatprep.subr.bf16.mxu0 0
      %374 = vmatpush1.bf16.msra.mxu0 0
      %375 = vmatprep.subr.bf16.mxu0 0
      %376 = vmatpush1.bf16.msra.mxu0 0
      %377 = vmatprep.subr.bf16.mxu0 0
      %378 = vmatpush1.bf16.msra.mxu0 0
      %379 = vmatprep.subr.bf16.mxu0 0
      %380 = vmatpush1.bf16.msra.mxu0 0
      %381 = vmatprep.subr.bf16.mxu0 0
      %382 = vmatpush1.bf16.msra.mxu0 0
      %383 = vmatprep.subr.bf16.mxu0 0
      %384 = vmatpush1.bf16.msra.mxu0 0
      %385 = vmatprep.subr.bf16.mxu0 0
      %386 = vmatpush1.bf16.msra.mxu0 0
      %387 = vmatprep.subr.bf16.mxu0 0
      %388 = vmatpush1.bf16.msra.mxu0 0
      %389 = vmatprep.subr.bf16.mxu0 0
      %390 = vmatpush1.bf16.msra.mxu0 0
      %391 = vmatprep.subr.bf16.mxu0 0
      %392 = vmatpush1.bf16.msra.mxu0 0
      %393 = vmatprep.subr.bf16.mxu0 0
      %394 = vmatpush1.bf16.msra.mxu0 0
      %395 = vmatprep.mubr.bf16.mxu0 0
      %396 = vmatmul.mubr.bf16.gmra.mrb[0].mxu0 %v312
      %v397 = vpop.f32.mrb[0].mxu0
      %v398 = vadd.f32 %v308, %v397
      %v399 = vpop.f32.mrb[0].mxu0
      %v400 = vpop.f32.mrb[0].mxu0
      %v401 = vadd.f32 %v308, %v400
      %v402 = vpop.f32.mrb[0].mxu0
      %403 = vmatprep.mubr.bf16.mxu0 0
      %404 = vmatmul.mubr.bf16.gmra.mrb[0].mxu0 %v315
      %v405 = vpop.f32.mrb[0].mxu0
      %v406 = vadd.f32 %v308, %v405
      %v407 = vpop.f32.mrb[0].mxu0
      %v408 = vpop.f32.mrb[0].mxu0
      %v409 = vadd.f32 %v308, %v408
      %v410 = vpop.f32.mrb[0].mxu0
      %411 = vmatprep.mubr.bf16.mxu0 0
      %412 = vmatmul.mubr.bf16.gmra.mrb[0].mxu0 %v318
      %v413 = vpop.f32.mrb[0].mxu0
      %v414 = vadd.f32 %v308, %v413
      %v415 = vpop.f32.mrb[0].mxu0
      %v416 = vpop.f32.mrb[0].mxu0
      %v417 = vadd.f32 %v308, %v416
      %v418 = vpop.f32.mrb[0].mxu0
      %419 = vmatprep.mubr.bf16.mxu0 0
      %420 = vmatmul.mubr.bf16.gmra.mrb[0].mxu0 %v321
      %v421 = vpop.f32.mrb[0].mxu0
      %v422 = vadd.f32 %v308, %v421
      %v423 = vpop.f32.mrb[0].mxu0
      %v424 = vpop.f32.mrb[0].mxu0
      %v425 = vadd.f32 %v308, %v424
      %v426 = vpop.f32.mrb[0].mxu0
      %427 = vmatprep.mubr.bf16.mxu0 0
      %428 = vmatmul.mubr.bf16.gmra.mrb[0].mxu0 %v324
      %v429 = vpop.f32.mrb[0].mxu0
      %v430 = vadd.f32 %v308, %v429
      %v431 = vpop.f32.mrb[0].mxu0
      %v432 = vpop.f32.mrb[0].mxu0
      %v433 = vadd.f32 %v308, %v432
      %v434 = vpop.f32.mrb[0].mxu0
      %435 = vmatprep.mubr.bf16.mxu0 0
      %436 = vmatmul.mubr.bf16.gmra.mrb[0].mxu0 %v327
      %v437 = vpop.f32.mrb[0].mxu0
      %v438 = vadd.f32 %v308, %v437
      %v439 = vpop.f32.mrb[0].mxu0
      %v440 = vpop.f32.mrb[0].mxu0
      %v441 = vadd.f32 %v308, %v440
      %v442 = vpop.f32.mrb[0].mxu0
      %443 = vmatprep.mubr.bf16.mxu0 0
      %444 = vmatmul.mubr.bf16.gmra.mrb[0].mxu0 %v330
      %v445 = vpop.f32.mrb[0].mxu0
      %v446 = vadd.f32 %v308, %v445
      %v447 = vpop.f32.mrb[0].mxu0
      %v448 = vpop.f32.mrb[0].mxu0
      %v449 = vadd.f32 %v308, %v448
      %v450 = vpop.f32.mrb[0].mxu0
      %451 = vmatprep.mubr.bf16.mxu0 0
      %452 = vmatmul.mubr.bf16.gmra.mrb[0].mxu0 %v333
      %v453 = vpop.f32.mrb[0].mxu0
      %v454 = vadd.f32 %v308, %v453
      %v455 = vpop.f32.mrb[0].mxu0
      %v456 = vpop.f32.mrb[0].mxu0
      %v457 = vadd.f32 %v308, %v456
      %v458 = vpop.f32.mrb[0].mxu0
      %459 = vmatprep.mubr.bf16.mxu0 0
      %460 = vmatmul.mubr.bf16.gmra.mrb[0].mxu0 %v336
      %v461 = vpop.f32.mrb[0].mxu0
      %v462 = vadd.f32 %v308, %v461
      %v463 = vpop.f32.mrb[0].mxu0
      %v464 = vpop.f32.mrb[0].mxu0
      %v465 = vadd.f32 %v308, %v464
      %v466 = vpop.f32.mrb[0].mxu0
      %467 = vmatprep.mubr.bf16.mxu0 0
      %468 = vmatmul.mubr.bf16.gmra.mrb[0].mxu0 %v339
      %v469 = vpop.f32.mrb[0].mxu0
      %v470 = vadd.f32 %v308, %v469
      %v471 = vpop.f32.mrb[0].mxu0
      %v472 = vpop.f32.mrb[0].mxu0
      %v473 = vadd.f32 %v308, %v472
      %v474 = vpop.f32.mrb[0].mxu0
      %475 = vmatprep.mubr.bf16.mxu0 0
      %476 = vmatmul.mubr.bf16.gmra.mrb[0].mxu0 %v342
      %v477 = vpop.f32.mrb[0].mxu0
      %v478 = vadd.f32 %v308, %v477
      %v479 = vpop.f32.mrb[0].mxu0
      %v480 = vpop.f32.mrb[0].mxu0
      %v481 = vadd.f32 %v308, %v480
      %v482 = vpop.f32.mrb[0].mxu0
      %483 = vmatprep.mubr.bf16.mxu0 0
      %484 = vmatmul.mubr.bf16.gmra.mrb[0].mxu0 %v345
      %v485 = vpop.f32.mrb[0].mxu0
      %v486 = vadd.f32 %v308, %v485
      %v487 = vpop.f32.mrb[0].mxu0
      %v488 = vpop.f32.mrb[0].mxu0
      %v489 = vadd.f32 %v308, %v488
      %v490 = vpop.f32.mrb[0].mxu0
      %491 = vmatprep.mubr.bf16.mxu0 0
      %492 = vmatmul.mubr.bf16.gmra.mrb[0].mxu0 %v348
      %v493 = vpop.f32.mrb[0].mxu0
      %v494 = vadd.f32 %v308, %v493
      %v495 = vpop.f32.mrb[0].mxu0
      %v496 = vpop.f32.mrb[0].mxu0
      %v497 = vadd.f32 %v308, %v496
      %v498 = vpop.f32.mrb[0].mxu0
      %499 = vmatprep.mubr.bf16.mxu0 0
      %500 = vmatmul.mubr.bf16.gmra.mrb[0].mxu0 %v351
      %v501 = vpop.f32.mrb[0].mxu0
      %v502 = vadd.f32 %v308, %v501
      %v503 = vpop.f32.mrb[0].mxu0
      %v504 = vpop.f32.mrb[0].mxu0
      %v505 = vadd.f32 %v308, %v504
      %v506 = vpop.f32.mrb[0].mxu0
      %507 = vmatprep.mubr.bf16.mxu0 0
      %508 = vmatmul.mubr.bf16.gmra.mrb[0].mxu0 %v354
      %v509 = vpop.f32.mrb[0].mxu0
      %v510 = vadd.f32 %v308, %v509
      %v511 = vpop.f32.mrb[0].mxu0
      %v512 = vpop.f32.mrb[0].mxu0
      %v513 = vadd.f32 %v308, %v512
      %v514 = vpop.f32.mrb[0].mxu0
      %515 = vmatprep.mubr.bf16.mxu0 0
      %516 = vmatmul.mubr.bf16.gmra.mrb[0].mxu0 %v357
      %v517 = vpop.f32.mrb[0].mxu0
      %v518 = vadd.f32 %v308, %v517
      %v519 = vpop.f32.mrb[0].mxu0
      %v520 = vpop.f32.mrb[0].mxu0
      %v521 = vadd.f32 %v308, %v520
      %v522 = vpop.f32.mrb[0].mxu0
      %523 = vdwg.mxu0
      %v524 = vxor.u32 %v398, 2147483648
      %v525 = vxor.u32 %v401, 2147483648
      %v526 = vxor.u32 %v406, 2147483648
      %v527 = vxor.u32 %v409, 2147483648
      %v528 = vxor.u32 %v414, 2147483648
      %v529 = vxor.u32 %v417, 2147483648
      %v530 = vxor.u32 %v422, 2147483648
      %v531 = vxor.u32 %v425, 2147483648
      %v532 = vxor.u32 %v430, 2147483648
      %v533 = vxor.u32 %v433, 2147483648
      %v534 = vxor.u32 %v438, 2147483648
      %v535 = vxor.u32 %v441, 2147483648
      %v536 = vxor.u32 %v446, 2147483648
      %v537 = vxor.u32 %v449, 2147483648
      %v538 = vxor.u32 %v454, 2147483648
      %v539 = vxor.u32 %v457, 2147483648
      %v540 = vxor.u32 %v462, 2147483648
      %v541 = vxor.u32 %v465, 2147483648
      %v542 = vxor.u32 %v470, 2147483648
      %v543 = vxor.u32 %v473, 2147483648
      %v544 = vxor.u32 %v478, 2147483648
      %v545 = vxor.u32 %v481, 2147483648
      %v546 = vxor.u32 %v486, 2147483648
      %v547 = vxor.u32 %v489, 2147483648
      %v548 = vxor.u32 %v494, 2147483648
      %v549 = vxor.u32 %v497, 2147483648
      %v550 = vxor.u32 %v502, 2147483648
      %v551 = vxor.u32 %v505, 2147483648
      %v552 = vxor.u32 %v510, 2147483648
      %v553 = vxor.u32 %v513, 2147483648
      %v554 = vxor.u32 %v518, 2147483648
      %v555 = vxor.u32 %v521, 2147483648
      %v556 = vmul.f32 %v524, 1.442695
      %v557 = vpow.pop %v556
      %v558 = vmul.f32 %v525, 1.442695
      %v559 = vpow.pop %v558
      %v560 = vmul.f32 %v526, 1.442695
      %v561 = vpow.pop %v560
      %v562 = vmul.f32 %v527, 1.442695
      %v563 = vpow.pop %v562
      %v564 = vmul.f32 %v528, 1.442695
      %v565 = vpow.pop %v564
      %v566 = vmul.f32 %v529, 1.442695
      %v567 = vpow.pop %v566
      %v568 = vmul.f32 %v530, 1.442695
      %v569 = vpow.pop %v568
      %v570 = vmul.f32 %v531, 1.442695
      %v571 = vpow.pop %v570
      %v572 = vmul.f32 %v532, 1.442695
      %v573 = vpow.pop %v572
      %v574 = vmul.f32 %v533, 1.442695
      %v575 = vpow.pop %v574
      %v576 = vmul.f32 %v534, 1.442695
      %v577 = vpow.pop %v576
      %v578 = vmul.f32 %v535, 1.442695
      %v579 = vpow.pop %v578
      %v580 = vmul.f32 %v536, 1.442695
      %v581 = vpow.pop %v580
      %v582 = vmul.f32 %v537, 1.442695
      %v583 = vpow.pop %v582
      %v584 = vmul.f32 %v538, 1.442695
      %v585 = vpow.pop %v584
      %v586 = vmul.f32 %v539, 1.442695
      %v587 = vpow.pop %v586
      %v588 = vmul.f32 %v540, 1.442695
      %v589 = vpow.pop %v588
      %v590 = vmul.f32 %v541, 1.442695
      %v591 = vpow.pop %v590
      %v592 = vmul.f32 %v542, 1.442695
      %v593 = vpow.pop %v592
      %v594 = vmul.f32 %v543, 1.442695
      %v595 = vpow.pop %v594
      %v596 = vmul.f32 %v544, 1.442695
      %v597 = vpow.pop %v596
      %v598 = vmul.f32 %v545, 1.442695
      %v599 = vpow.pop %v598
      %v600 = vmul.f32 %v546, 1.442695
      %v601 = vpow.pop %v600
      %v602 = vmul.f32 %v547, 1.442695
      %v603 = vpow.pop %v602
      %v604 = vmul.f32 %v548, 1.442695
      %v605 = vpow.pop %v604
      %v606 = vmul.f32 %v549, 1.442695
      %v607 = vpow.pop %v606
      %v608 = vmul.f32 %v550, 1.442695
      %v609 = vpow.pop %v608
      %v610 = vmul.f32 %v551, 1.442695
      %v611 = vpow.pop %v610
      %v612 = vmul.f32 %v552, 1.442695
      %v613 = vpow.pop %v612
      %v614 = vmul.f32 %v553, 1.442695
      %v615 = vpow.pop %v614
      %v616 = vmul.f32 %v554, 1.442695
      %v617 = vpow.pop %v616
      %v618 = vmul.f32 %v555, 1.442695
      %v619 = vpow.pop %v618
      %v620 = vadd.f32 %v557, 1.0
      %v621 = vadd.f32 %v559, 1.0
      %v622 = vadd.f32 %v561, 1.0
      %v623 = vadd.f32 %v563, 1.0
      %v624 = vadd.f32 %v565, 1.0
      %v625 = vadd.f32 %v567, 1.0
      %v626 = vadd.f32 %v569, 1.0
      %v627 = vadd.f32 %v571, 1.0
      %v628 = vadd.f32 %v573, 1.0
      %v629 = vadd.f32 %v575, 1.0
      %v630 = vadd.f32 %v577, 1.0
      %v631 = vadd.f32 %v579, 1.0
      %v632 = vadd.f32 %v581, 1.0
      %v633 = vadd.f32 %v583, 1.0
      %v634 = vadd.f32 %v585, 1.0
      %v635 = vadd.f32 %v587, 1.0
      %v636 = vadd.f32 %v589, 1.0
      %v637 = vadd.f32 %v591, 1.0
      %v638 = vadd.f32 %v593, 1.0
      %v639 = vadd.f32 %v595, 1.0
      %v640 = vadd.f32 %v597, 1.0
      %v641 = vadd.f32 %v599, 1.0
      %v642 = vadd.f32 %v601, 1.0
      %v643 = vadd.f32 %v603, 1.0
      %v644 = vadd.f32 %v605, 1.0
      %v645 = vadd.f32 %v607, 1.0
      %v646 = vadd.f32 %v609, 1.0
      %v647 = vadd.f32 %v611, 1.0
      %v648 = vadd.f32 %v613, 1.0
      %v649 = vadd.f32 %v615, 1.0
      %v650 = vadd.f32 %v617, 1.0
      %v651 = vadd.f32 %v619, 1.0
      %v652 = vrcp.pop %v620
      %v653 = vmul.f32 1.0, %v652
      %v654 = vrcp.pop %v621
      %v655 = vmul.f32 1.0, %v654
      %v656 = vrcp.pop %v622
      %v657 = vmul.f32 1.0, %v656
      %v658 = vrcp.pop %v623
      %v659 = vmul.f32 1.0, %v658
      %v660 = vrcp.pop %v624
      %v661 = vmul.f32 1.0, %v660
      %v662 = vrcp.pop %v625
      %v663 = vmul.f32 1.0, %v662
      %v664 = vrcp.pop %v626
      %v665 = vmul.f32 1.0, %v664
      %v666 = vrcp.pop %v627
      %v667 = vmul.f32 1.0, %v666
      %v668 = vrcp.pop %v628
      %v669 = vmul.f32 1.0, %v668
      %v670 = vrcp.pop %v629
      %v671 = vmul.f32 1.0, %v670
      %v672 = vrcp.pop %v630
      %v673 = vmul.f32 1.0, %v672
      %v674 = vrcp.pop %v631
      %v675 = vmul.f32 1.0, %v674
      %v676 = vrcp.pop %v632
      %v677 = vmul.f32 1.0, %v676
      %v678 = vrcp.pop %v633
      %v679 = vmul.f32 1.0, %v678
      %v680 = vrcp.pop %v634
      %v681 = vmul.f32 1.0, %v680
      %v682 = vrcp.pop %v635
      %v683 = vmul.f32 1.0, %v682
      %v684 = vrcp.pop %v636
      %v685 = vmul.f32 1.0, %v684
      %v686 = vrcp.pop %v637
      %v687 = vmul.f32 1.0, %v686
      %v688 = vrcp.pop %v638
      %v689 = vmul.f32 1.0, %v688
      %v690 = vrcp.pop %v639
      %v691 = vmul.f32 1.0, %v690
      %v692 = vrcp.pop %v640
      %v693 = vmul.f32 1.0, %v692
      %v694 = vrcp.pop %v641
      %v695 = vmul.f32 1.0, %v694
      %v696 = vrcp.pop %v642
      %v697 = vmul.f32 1.0, %v696
      %v698 = vrcp.pop %v643
      %v699 = vmul.f32 1.0, %v698
      %v700 = vrcp.pop %v644
      %v701 = vmul.f32 1.0, %v700
      %v702 = vrcp.pop %v645
      %v703 = vmul.f32 1.0, %v702
      %v704 = vrcp.pop %v646
      %v705 = vmul.f32 1.0, %v704
      %v706 = vrcp.pop %v647
      %v707 = vmul.f32 1.0, %v706
      %v708 = vrcp.pop %v648
      %v709 = vmul.f32 1.0, %v708
      %v710 = vrcp.pop %v649
      %v711 = vmul.f32 1.0, %v710
      %v712 = vrcp.pop %v650
      %v713 = vmul.f32 1.0, %v712
      %v714 = vrcp.pop %v651
      %v715 = vmul.f32 1.0, %v714
      %v716 = vmul.f32 %v398, %v653
      %v717 = vmul.f32 %v401, %v655
      %v718 = vmul.f32 %v406, %v657
      %v719 = vmul.f32 %v409, %v659
      %v720 = vmul.f32 %v414, %v661
      %v721 = vmul.f32 %v417, %v663
      %v722 = vmul.f32 %v422, %v665
      %v723 = vmul.f32 %v425, %v667
      %v724 = vmul.f32 %v430, %v669
      %v725 = vmul.f32 %v433, %v671
      %v726 = vmul.f32 %v438, %v673
      %v727 = vmul.f32 %v441, %v675
      %v728 = vmul.f32 %v446, %v677
      %v729 = vmul.f32 %v449, %v679
      %v730 = vmul.f32 %v454, %v681
      %v731 = vmul.f32 %v457, %v683
      %v732 = vmul.f32 %v462, %v685
      %v733 = vmul.f32 %v465, %v687
      %v734 = vmul.f32 %v470, %v689
      %v735 = vmul.f32 %v473, %v691
      %v736 = vmul.f32 %v478, %v693
      %v737 = vmul.f32 %v481, %v695
      %v738 = vmul.f32 %v486, %v697
      %v739 = vmul.f32 %v489, %v699
      %v740 = vmul.f32 %v494, %v701
      %v741 = vmul.f32 %v497, %v703
      %v742 = vmul.f32 %v502, %v705
      %v743 = vmul.f32 %v505, %v707
      %v744 = vmul.f32 %v510, %v709
      %v745 = vmul.f32 %v513, %v711
      %v746 = vmul.f32 %v518, %v713
      %v747 = vmul.f32 %v521, %v715
      %vm748 = vcmask 31744
      %749 = vst.msk [vmem:[#allocation2] sm:$0xff] %vm748, 0.0
      %750 = vst.msk [vmem:[#allocation2 + $0x8] sm:$0xff] %vm748, 0.0
      %vm751 = vcmask 25600
      %752 = vst.msk [vmem:[#allocation2 + $0x10] sm:$0x3] %vm751, 0.0
      %s753 = scalar_lea.vmem [#allocation2], 408
      %754 = vst.msk [vmem:[%s753] sm:$0xff] %vm748, 0.0
      %755 = vst.msk [vmem:[%s753 + $0x8] sm:$0xff] %vm748, 0.0
      %756 = vst.msk [vmem:[%s753 + $0x10] sm:$0x3] %vm751, 0.0
      %vm757 = vcmask 24576
      %758 = vst.msk [vmem:[#allocation2] sm:$0x1] %vm757, 0.0
      %759 = vst.msk [vmem:[#allocation2 + $0x18] sm:$0x1] %vm757, 0.0
      %760 = vst.msk [vmem:[#allocation2 + $0x30] sm:$0x1] %vm757, 0.0
      %761 = vst.msk [vmem:[#allocation2 + $0x48] sm:$0x1] %vm757, 0.0
      %762 = vst.msk [vmem:[#allocation2 + $0x60] sm:$0x1] %vm757, 0.0
      %763 = vst.msk [vmem:[#allocation2 + $0x78] sm:$0x1] %vm757, 0.0
      %764 = vst.msk [vmem:[#allocation2 + $0x90] sm:$0x1] %vm757, 0.0
      %765 = vst.msk [vmem:[#allocation2 + $0xa8] sm:$0x1] %vm757, 0.0
      %766 = vst.msk [vmem:[#allocation2 + $0xc0] sm:$0x1] %vm757, 0.0
      %767 = vst.msk [vmem:[#allocation2 + $0xd8] sm:$0x1] %vm757, 0.0
      %768 = vst.msk [vmem:[#allocation2 + $0xf0] sm:$0x1] %vm757, 0.0
      %769 = vst.msk [vmem:[#allocation2 + $0x108] sm:$0x1] %vm757, 0.0
      %770 = vst.msk [vmem:[#allocation2 + $0x120] sm:$0x1] %vm757, 0.0
      %771 = vst.msk [vmem:[#allocation2 + $0x138] sm:$0x1] %vm757, 0.0
      %772 = vst.msk [vmem:[#allocation2 + $0x150] sm:$0x1] %vm757, 0.0
      %773 = vst.msk [vmem:[#allocation2 + $0x168] sm:$0x1] %vm757, 0.0
      %774 = vst.msk [vmem:[#allocation2 + $0x180] sm:$0x1] %vm757, 0.0
      %775 = vst.msk [vmem:[#allocation2 + $0x198] sm:$0x1] %vm757, 0.0
      %776 = vst.msk [vmem:[#allocation2 + $0x11] sm:$0x1] %vm757, 0.0
      %777 = vst.msk [vmem:[#allocation2 + $0x29] sm:$0x1] %vm757, 0.0
      %778 = vst.msk [vmem:[#allocation2 + $0x41] sm:$0x1] %vm757, 0.0
      %779 = vst.msk [vmem:[#allocation2 + $0x59] sm:$0x1] %vm757, 0.0
      %780 = vst.msk [vmem:[#allocation2 + $0x71] sm:$0x1] %vm757, 0.0
      %781 = vst.msk [vmem:[#allocation2 + $0x89] sm:$0x1] %vm757, 0.0
      %782 = vst.msk [vmem:[#allocation2 + $0xa1] sm:$0x1] %vm757, 0.0
      %783 = vst.msk [vmem:[#allocation2 + $0xb9] sm:$0x1] %vm757, 0.0
      %784 = vst.msk [vmem:[#allocation2 + $0xd1] sm:$0x1] %vm757, 0.0
      %785 = vst.msk [vmem:[#allocation2 + $0xe9] sm:$0x1] %vm757, 0.0
      %786 = vst.msk [vmem:[#allocation2 + $0x101] sm:$0x1] %vm757, 0.0
      %787 = vst.msk [vmem:[#allocation2 + $0x119] sm:$0x1] %vm757, 0.0
      %788 = vst.msk [vmem:[#allocation2 + $0x131] sm:$0x1] %vm757, 0.0
      %789 = vst.msk [vmem:[#allocation2 + $0x149] sm:$0x1] %vm757, 0.0
      %790 = vst.msk [vmem:[#allocation2 + $0x161] sm:$0x1] %vm757, 0.0
      %791 = vst.msk [vmem:[#allocation2 + $0x179] sm:$0x1] %vm757, 0.0
      %792 = vst.msk [vmem:[#allocation2 + $0x191] sm:$0x1] %vm757, 0.0
      %793 = vst.msk [vmem:[#allocation2 + $0x1a9] sm:$0x1] %vm757, 0.0
      %s794 = scalar_lea.vmem [#allocation2], 24
      %795 = vst.msk [vmem:[%s794 + $0x1] sm:$0xff] %vm748, %v716
      %796 = vst.msk [vmem:[%s794 + $0x9] sm:$0xff] %vm748, %v717
      %797 = vst.msk [vmem:[%s794 + $0x19] sm:$0xff] %vm748, %v718
      %798 = vst.msk [vmem:[%s794 + $0x21] sm:$0xff] %vm748, %v719
      %799 = vst.msk [vmem:[%s794 + $0x31] sm:$0xff] %vm748, %v720
      %800 = vst.msk [vmem:[%s794 + $0x39] sm:$0xff] %vm748, %v721
      %801 = vst.msk [vmem:[%s794 + $0x49] sm:$0xff] %vm748, %v722
      %802 = vst.msk [vmem:[%s794 + $0x51] sm:$0xff] %vm748, %v723
      %803 = vst.msk [vmem:[%s794 + $0x61] sm:$0xff] %vm748, %v724
      %804 = vst.msk [vmem:[%s794 + $0x69] sm:$0xff] %vm748, %v725
      %805 = vst.msk [vmem:[%s794 + $0x79] sm:$0xff] %vm748, %v726
      %806 = vst.msk [vmem:[%s794 + $0x81] sm:$0xff] %vm748, %v727
      %807 = vst.msk [vmem:[%s794 + $0x91] sm:$0xff] %vm748, %v728
      %808 = vst.msk [vmem:[%s794 + $0x99] sm:$0xff] %vm748, %v729
      %809 = vst.msk [vmem:[%s794 + $0xa9] sm:$0xff] %vm748, %v730
      %810 = vst.msk [vmem:[%s794 + $0xb1] sm:$0xff] %vm748, %v731
      %811 = vst.msk [vmem:[%s794 + $0xc1] sm:$0xff] %vm748, %v732
      %812 = vst.msk [vmem:[%s794 + $0xc9] sm:$0xff] %vm748, %v733
      %813 = vst.msk [vmem:[%s794 + $0xd9] sm:$0xff] %vm748, %v734
      %814 = vst.msk [vmem:[%s794 + $0xe1] sm:$0xff] %vm748, %v735
      %815 = vst.msk [vmem:[%s794 + $0xf1] sm:$0xff] %vm748, %v736
      %816 = vst.msk [vmem:[%s794 + $0xf9] sm:$0xff] %vm748, %v737
      %817 = vst.msk [vmem:[%s794 + $0x109] sm:$0xff] %vm748, %v738
      %818 = vst.msk [vmem:[%s794 + $0x111] sm:$0xff] %vm748, %v739
      %819 = vst.msk [vmem:[%s794 + $0x121] sm:$0xff] %vm748, %v740
      %820 = vst.msk [vmem:[%s794 + $0x129] sm:$0xff] %vm748, %v741
      %821 = vst.msk [vmem:[%s794 + $0x139] sm:$0xff] %vm748, %v742
      %822 = vst.msk [vmem:[%s794 + $0x141] sm:$0xff] %vm748, %v743
      %823 = vst.msk [vmem:[%s794 + $0x151] sm:$0xff] %vm748, %v744
      %824 = vst.msk [vmem:[%s794 + $0x159] sm:$0xff] %vm748, %v745
      %825 = vst.msk [vmem:[%s794 + $0x169] sm:$0xff] %vm748, %v746
      %826 = vst.msk [vmem:[%s794 + $0x171] sm:$0xff] %vm748, %v747
      %v827 = vld [vmem:[#allocation2] sm:$0xff]
      %v828 = vld [vmem:[#allocation2 + $0x8] sm:$0xff]
      %v829 = vld [vmem:[#allocation2 + $0x18] sm:$0xff]
      %v830 = vld [vmem:[#allocation2 + $0x20] sm:$0xff]
      %v831 = vld [vmem:[#allocation2 + $0x30] sm:$0xff]
      %v832 = vld [vmem:[#allocation2 + $0x38] sm:$0xff]
      %v833 = vld [vmem:[#allocation2 + $0x48] sm:$0xff]
      %v834 = vld [vmem:[#allocation2 + $0x50] sm:$0xff]
      %v835 = vld [vmem:[#allocation2 + $0x60] sm:$0xff]
      %v836 = vld [vmem:[#allocation2 + $0x68] sm:$0xff]
      %v837 = vld [vmem:[#allocation2 + $0x78] sm:$0xff]
      %v838 = vld [vmem:[#allocation2 + $0x80] sm:$0xff]
      %v839 = vld [vmem:[#allocation2 + $0x90] sm:$0xff]
      %v840 = vld [vmem:[#allocation2 + $0x98] sm:$0xff]
      %v841 = vld [vmem:[#allocation2 + $0xa8] sm:$0xff]
      %v842 = vld [vmem:[#allocation2 + $0xb0] sm:$0xff]
      %v843 = vld [vmem:[#allocation2 + $0xc0] sm:$0xff]
      %v844 = vld [vmem:[#allocation2 + $0xc8] sm:$0xff]
      %v845 = vld [vmem:[#allocation2 + $0xd8] sm:$0xff]
      %v846 = vld [vmem:[#allocation2 + $0xe0] sm:$0xff]
      %v847 = vld [vmem:[#allocation2 + $0xf0] sm:$0xff]
      %v848 = vld [vmem:[#allocation2 + $0xf8] sm:$0xff]
      %v849 = vld [vmem:[#allocation2 + $0x108] sm:$0xff]
      %v850 = vld [vmem:[#allocation2 + $0x110] sm:$0xff]
      %v851 = vld [vmem:[#allocation2 + $0x120] sm:$0xff]
      %v852 = vld [vmem:[#allocation2 + $0x128] sm:$0xff]
      %v853 = vld [vmem:[#allocation2 + $0x138] sm:$0xff]
      %v854 = vld [vmem:[#allocation2 + $0x140] sm:$0xff]
      %v855 = vld [vmem:[#allocation2 + $0x150] sm:$0xff]
      %v856 = vld [vmem:[#allocation2 + $0x158] sm:$0xff]
      %v857 = vld [vmem:[#allocation2 + $0x168] sm:$0xff]
      %v858 = vld [vmem:[#allocation2 + $0x170] sm:$0xff]
      %v859 = vpack.c.bf16 %v828, %v827
      %v860 = vpack.c.bf16 %v830, %v829
      %v861 = vpack.c.bf16 %v832, %v831
      %v862 = vpack.c.bf16 %v834, %v833
      %v863 = vpack.c.bf16 %v836, %v835
      %v864 = vpack.c.bf16 %v838, %v837
      %v865 = vpack.c.bf16 %v840, %v839
      %v866 = vpack.c.bf16 %v842, %v841
      %v867 = vpack.c.bf16 %v844, %v843
      %v868 = vpack.c.bf16 %v846, %v845
      %v869 = vpack.c.bf16 %v848, %v847
      %v870 = vpack.c.bf16 %v850, %v849
      %v871 = vpack.c.bf16 %v852, %v851
      %v872 = vpack.c.bf16 %v854, %v853
      %v873 = vpack.c.bf16 %v856, %v855
      %v874 = vpack.c.bf16 %v858, %v857
      %875 = vst.msk [vmem:[#allocation3] sm:$0xff] %vm748, %v859
      %876 = vst.msk [vmem:[#allocation3 + $0x8] sm:$0xff] %vm748, %v860
      %877 = vst.msk [vmem:[#allocation3 + $0x10] sm:$0xff] %vm748, %v861
      %878 = vst.msk [vmem:[#allocation3 + $0x18] sm:$0xff] %vm748, %v862
      %879 = vst.msk [vmem:[#allocation3 + $0x20] sm:$0xff] %vm748, %v863
      %880 = vst.msk [vmem:[#allocation3 + $0x28] sm:$0xff] %vm748, %v864
      %881 = vst.msk [vmem:[#allocation3 + $0x30] sm:$0xff] %vm748, %v865
      %882 = vst.msk [vmem:[#allocation3 + $0x38] sm:$0xff] %vm748, %v866
      %883 = vst.msk [vmem:[#allocation3 + $0x40] sm:$0xff] %vm748, %v867
      %884 = vst.msk [vmem:[#allocation3 + $0x48] sm:$0xff] %vm748, %v868
      %885 = vst.msk [vmem:[#allocation3 + $0x50] sm:$0xff] %vm748, %v869
      %886 = vst.msk [vmem:[#allocation3 + $0x58] sm:$0xff] %vm748, %v870
      %887 = vst.msk [vmem:[#allocation3 + $0x60] sm:$0xff] %vm748, %v871
      %888 = vst.msk [vmem:[#allocation3 + $0x68] sm:$0xff] %vm748, %v872
      %889 = vst.msk [vmem:[#allocation3 + $0x70] sm:$0xff] %vm748, %v873
      %890 = vst.msk [vmem:[#allocation3 + $0x78] sm:$0xff] %vm748, %v874
      %v891 = vld [vmem:[#allocation2 + $0x1] sm:$0xff]
      %v892 = vld [vmem:[#allocation2 + $0x9] sm:$0xff]
      %v893 = vld [vmem:[#allocation2 + $0x19] sm:$0xff]
      %v894 = vld [vmem:[#allocation2 + $0x21] sm:$0xff]
      %v895 = vld [vmem:[#allocation2 + $0x31] sm:$0xff]
      %v896 = vld [vmem:[#allocation2 + $0x39] sm:$0xff]
      %v897 = vld [vmem:[#allocation2 + $0x49] sm:$0xff]
      %v898 = vld [vmem:[#allocation2 + $0x51] sm:$0xff]
      %v899 = vld [vmem:[#allocation2 + $0x61] sm:$0xff]
      %v900 = vld [vmem:[#allocation2 + $0x69] sm:$0xff]
      %v901 = vld [vmem:[#allocation2 + $0x79] sm:$0xff]
      %v902 = vld [vmem:[#allocation2 + $0x81] sm:$0xff]
      %v903 = vld [vmem:[#allocation2 + $0x91] sm:$0xff]
      %v904 = vld [vmem:[#allocation2 + $0x99] sm:$0xff]
      %v905 = vld [vmem:[#allocation2 + $0xa9] sm:$0xff]
      %v906 = vld [vmem:[#allocation2 + $0xb1] sm:$0xff]
      %v907 = vld [vmem:[#allocation2 + $0xc1] sm:$0xff]
      %v908 = vld [vmem:[#allocation2 + $0xc9] sm:$0xff]
      %v909 = vld [vmem:[#allocation2 + $0xd9] sm:$0xff]
      %v910 = vld [vmem:[#allocation2 + $0xe1] sm:$0xff]
      %v911 = vld [vmem:[#allocation2 + $0xf1] sm:$0xff]
      %v912 = vld [vmem:[#allocation2 + $0xf9] sm:$0xff]
      %v913 = vld [vmem:[#allocation2 + $0x109] sm:$0xff]
      %v914 = vld [vmem:[#allocation2 + $0x111] sm:$0xff]
      %v915 = vld [vmem:[#allocation2 + $0x121] sm:$0xff]
      %v916 = vld [vmem:[#allocation2 + $0x129] sm:$0xff]
      %v917 = vld [vmem:[#allocation2 + $0x139] sm:$0xff]
      %v918 = vld [vmem:[#allocation2 + $0x141] sm:$0xff]
      %v919 = vld [vmem:[#allocation2 + $0x151] sm:$0xff]
      %v920 = vld [vmem:[#allocation2 + $0x159] sm:$0xff]
      %v921 = vld [vmem:[#allocation2 + $0x169] sm:$0xff]
      %v922 = vld [vmem:[#allocation2 + $0x171] sm:$0xff]
      %v923 = vpack.c.bf16 %v892, %v891
      %v924 = vpack.c.bf16 %v894, %v893
      %v925 = vpack.c.bf16 %v896, %v895
      %v926 = vpack.c.bf16 %v898, %v897
      %v927 = vpack.c.bf16 %v900, %v899
      %v928 = vpack.c.bf16 %v902, %v901
      %v929 = vpack.c.bf16 %v904, %v903
      %v930 = vpack.c.bf16 %v906, %v905
      %v931 = vpack.c.bf16 %v908, %v907
      %v932 = vpack.c.bf16 %v910, %v909
      %v933 = vpack.c.bf16 %v912, %v911
      %v934 = vpack.c.bf16 %v914, %v913
      %v935 = vpack.c.bf16 %v916, %v915
      %v936 = vpack.c.bf16 %v918, %v917
      %v937 = vpack.c.bf16 %v920, %v919
      %v938 = vpack.c.bf16 %v922, %v921
      %955 = vrot.lane.b32.xlu0 %v923, 4
      %v956 = vpop.permute.xlu0 %955
      %957 = vrot.lane.b32.xlu0 %v924, 4
      %v958 = vpop.permute.xlu0 %957
      %959 = vrot.lane.b32.xlu0 %v925, 4
      %v960 = vpop.permute.xlu0 %959
      %961 = vrot.lane.b32.xlu0 %v926, 4
      %v962 = vpop.permute.xlu0 %961
      %963 = vrot.lane.b32.xlu0 %v927, 4
      %v964 = vpop.permute.xlu0 %963
      %965 = vrot.lane.b32.xlu0 %v928, 4
      %v966 = vpop.permute.xlu0 %965
      %967 = vrot.lane.b32.xlu0 %v929, 4
      %v968 = vpop.permute.xlu0 %967
      %969 = vrot.lane.b32.xlu0 %v930, 4
      %v970 = vpop.permute.xlu0 %969
      %971 = vrot.lane.b32.xlu0 %v931, 4
      %v972 = vpop.permute.xlu0 %971
      %973 = vrot.lane.b32.xlu0 %v932, 4
      %v974 = vpop.permute.xlu0 %973
      %975 = vrot.lane.b32.xlu0 %v933, 4
      %v976 = vpop.permute.xlu0 %975
      %977 = vrot.lane.b32.xlu0 %v934, 4
      %v978 = vpop.permute.xlu0 %977
      %979 = vrot.lane.b32.xlu0 %v935, 4
      %v980 = vpop.permute.xlu0 %979
      %981 = vrot.lane.b32.xlu0 %v936, 4
      %v982 = vpop.permute.xlu0 %981
      %983 = vrot.lane.b32.xlu0 %v937, 4
      %v984 = vpop.permute.xlu0 %983
      %985 = vrot.lane.b32.xlu0 %v938, 4
      %v986 = vpop.permute.xlu0 %985
      %vm1003 = vcmask 64544
      %1004 = vst.msk [vmem:[#allocation3] sm:$0xff] %vm1003, %v956
      %1005 = vst.msk [vmem:[#allocation3 + $0x8] sm:$0xff] %vm1003, %v958
      %1006 = vst.msk [vmem:[#allocation3 + $0x10] sm:$0xff] %vm1003, %v960
      %1007 = vst.msk [vmem:[#allocation3 + $0x18] sm:$0xff] %vm1003, %v962
      %1008 = vst.msk [vmem:[#allocation3 + $0x20] sm:$0xff] %vm1003, %v964
      %1009 = vst.msk [vmem:[#allocation3 + $0x28] sm:$0xff] %vm1003, %v966
      %1010 = vst.msk [vmem:[#allocation3 + $0x30] sm:$0xff] %vm1003, %v968
      %1011 = vst.msk [vmem:[#allocation3 + $0x38] sm:$0xff] %vm1003, %v970
      %1012 = vst.msk [vmem:[#allocation3 + $0x40] sm:$0xff] %vm1003, %v972
      %1013 = vst.msk [vmem:[#allocation3 + $0x48] sm:$0xff] %vm1003, %v974
      %1014 = vst.msk [vmem:[#allocation3 + $0x50] sm:$0xff] %vm1003, %v976
      %1015 = vst.msk [vmem:[#allocation3 + $0x58] sm:$0xff] %vm1003, %v978
      %1016 = vst.msk [vmem:[#allocation3 + $0x60] sm:$0xff] %vm1003, %v980
      %1017 = vst.msk [vmem:[#allocation3 + $0x68] sm:$0xff] %vm1003, %v982
      %1018 = vst.msk [vmem:[#allocation3 + $0x70] sm:$0xff] %vm1003, %v984
      %1019 = vst.msk [vmem:[#allocation3 + $0x78] sm:$0xff] %vm1003, %v986
      %v1020 = vld [vmem:[#allocation2 + $0x2] sm:$0xff]
      %v1021 = vld [vmem:[#allocation2 + $0xa] sm:$0xff]
      %v1022 = vld [vmem:[#allocation2 + $0x1a] sm:$0xff]
      %v1023 = vld [vmem:[#allocation2 + $0x22] sm:$0xff]
      %v1024 = vld [vmem:[#allocation2 + $0x32] sm:$0xff]
      %v1025 = vld [vmem:[#allocation2 + $0x3a] sm:$0xff]
      %v1026 = vld [vmem:[#allocation2 + $0x4a] sm:$0xff]
      %v1027 = vld [vmem:[#allocation2 + $0x52] sm:$0xff]
      %v1028 = vld [vmem:[#allocation2 + $0x62] sm:$0xff]
      %v1029 = vld [vmem:[#allocation2 + $0x6a] sm:$0xff]
      %v1030 = vld [vmem:[#allocation2 + $0x7a] sm:$0xff]
      %v1031 = vld [vmem:[#allocation2 + $0x82] sm:$0xff]
      %v1032 = vld [vmem:[#allocation2 + $0x92] sm:$0xff]
      %v1033 = vld [vmem:[#allocation2 + $0x9a] sm:$0xff]
      %v1034 = vld [vmem:[#allocation2 + $0xaa] sm:$0xff]
      %v1035 = vld [vmem:[#allocation2 + $0xb2] sm:$0xff]
      %v1036 = vld [vmem:[#allocation2 + $0xc2] sm:$0xff]
      %v1037 = vld [vmem:[#allocation2 + $0xca] sm:$0xff]
      %v1038 = vld [vmem:[#allocation2 + $0xda] sm:$0xff]
      %v1039 = vld [vmem:[#allocation2 + $0xe2] sm:$0xff]
      %v1040 = vld [vmem:[#allocation2 + $0xf2] sm:$0xff]
      %v1041 = vld [vmem:[#allocation2 + $0xfa] sm:$0xff]
      %v1042 = vld [vmem:[#allocation2 + $0x10a] sm:$0xff]
      %v1043 = vld [vmem:[#allocation2 + $0x112] sm:$0xff]
      %v1044 = vld [vmem:[#allocation2 + $0x122] sm:$0xff]
      %v1045 = vld [vmem:[#allocation2 + $0x12a] sm:$0xff]
      %v1046 = vld [vmem:[#allocation2 + $0x13a] sm:$0xff]
      %v1047 = vld [vmem:[#allocation2 + $0x142] sm:$0xff]
      %v1048 = vld [vmem:[#allocation2 + $0x152] sm:$0xff]
      %v1049 = vld [vmem:[#allocation2 + $0x15a] sm:$0xff]
      %v1050 = vld [vmem:[#allocation2 + $0x16a] sm:$0xff]
      %v1051 = vld [vmem:[#allocation2 + $0x172] sm:$0xff]
      %v1052 = vpack.c.bf16 %v1021, %v1020
      %v1053 = vpack.c.bf16 %v1023, %v1022
      %v1054 = vpack.c.bf16 %v1025, %v1024
      %v1055 = vpack.c.bf16 %v1027, %v1026
      %v1056 = vpack.c.bf16 %v1029, %v1028
      %v1057 = vpack.c.bf16 %v1031, %v1030
      %v1058 = vpack.c.bf16 %v1033, %v1032
      %v1059 = vpack.c.bf16 %v1035, %v1034
      %v1060 = vpack.c.bf16 %v1037, %v1036
      %v1061 = vpack.c.bf16 %v1039, %v1038
      %v1062 = vpack.c.bf16 %v1041, %v1040
      %v1063 = vpack.c.bf16 %v1043, %v1042
      %v1064 = vpack.c.bf16 %v1045, %v1044
      %v1065 = vpack.c.bf16 %v1047, %v1046
      %v1066 = vpack.c.bf16 %v1049, %v1048
      %v1067 = vpack.c.bf16 %v1051, %v1050
      %1084 = vrot.lane.b32.xlu0 %v1052, 8
      %v1085 = vpop.permute.xlu0 %1084
      %1086 = vrot.lane.b32.xlu0 %v1053, 8
      %v1087 = vpop.permute.xlu0 %1086
      %1088 = vrot.lane.b32.xlu0 %v1054, 8
      %v1089 = vpop.permute.xlu0 %1088
      %1090 = vrot.lane.b32.xlu0 %v1055, 8
      %v1091 = vpop.permute.xlu0 %1090
      %1092 = vrot.lane.b32.xlu0 %v1056, 8
      %v1093 = vpop.permute.xlu0 %1092
      %1094 = vrot.lane.b32.xlu0 %v1057, 8
      %v1095 = vpop.permute.xlu0 %1094
      %1096 = vrot.lane.b32.xlu0 %v1058, 8
      %v1097 = vpop.permute.xlu0 %1096
      %1098 = vrot.lane.b32.xlu0 %v1059, 8
      %v1099 = vpop.permute.xlu0 %1098
      %1100 = vrot.lane.b32.xlu0 %v1060, 8
      %v1101 = vpop.permute.xlu0 %1100
      %1102 = vrot.lane.b32.xlu0 %v1061, 8
      %v1103 = vpop.permute.xlu0 %1102
      %1104 = vrot.lane.b32.xlu0 %v1062, 8
      %v1105 = vpop.permute.xlu0 %1104
      %1106 = vrot.lane.b32.xlu0 %v1063, 8
      %v1107 = vpop.permute.xlu0 %1106
      %1108 = vrot.lane.b32.xlu0 %v1064, 8
      %v1109 = vpop.permute.xlu0 %1108
      %1110 = vrot.lane.b32.xlu0 %v1065, 8
      %v1111 = vpop.permute.xlu0 %1110
      %1112 = vrot.lane.b32.xlu0 %v1066, 8
      %v1113 = vpop.permute.xlu0 %1112
      %1114 = vrot.lane.b32.xlu0 %v1067, 8
      %v1115 = vpop.permute.xlu0 %1114
      %vm1132 = vcmask 97344
      %1133 = vst.msk [vmem:[#allocation3] sm:$0xff] %vm1132, %v1085
      %1134 = vst.msk [vmem:[#allocation3 + $0x8] sm:$0xff] %vm1132, %v1087
      %1135 = vst.msk [vmem:[#allocation3 + $0x10] sm:$0xff] %vm1132, %v1089
      %1136 = vst.msk [vmem:[#allocation3 + $0x18] sm:$0xff] %vm1132, %v1091
      %1137 = vst.msk [vmem:[#allocation3 + $0x20] sm:$0xff] %vm1132, %v1093
      %1138 = vst.msk [vmem:[#allocation3 + $0x28] sm:$0xff] %vm1132, %v1095
      %1139 = vst.msk [vmem:[#allocation3 + $0x30] sm:$0xff] %vm1132, %v1097
      %1140 = vst.msk [vmem:[#allocation3 + $0x38] sm:$0xff] %vm1132, %v1099
      %1141 = vst.msk [vmem:[#allocation3 + $0x40] sm:$0xff] %vm1132, %v1101
      %1142 = vst.msk [vmem:[#allocation3 + $0x48] sm:$0xff] %vm1132, %v1103
      %1143 = vst.msk [vmem:[#allocation3 + $0x50] sm:$0xff] %vm1132, %v1105
      %1144 = vst.msk [vmem:[#allocation3 + $0x58] sm:$0xff] %vm1132, %v1107
      %1145 = vst.msk [vmem:[#allocation3 + $0x60] sm:$0xff] %vm1132, %v1109
      %1146 = vst.msk [vmem:[#allocation3 + $0x68] sm:$0xff] %vm1132, %v1111
      %1147 = vst.msk [vmem:[#allocation3 + $0x70] sm:$0xff] %vm1132, %v1113
      %1148 = vst.msk [vmem:[#allocation3 + $0x78] sm:$0xff] %vm1132, %v1115
      %v1149 = vld [vmem:[%s794] sm:$0xff]
      %v1150 = vld [vmem:[%s794 + $0x8] sm:$0xff]
      %v1151 = vld [vmem:[%s794 + $0x18] sm:$0xff]
      %v1152 = vld [vmem:[%s794 + $0x20] sm:$0xff]
      %v1153 = vld [vmem:[%s794 + $0x30] sm:$0xff]
      %v1154 = vld [vmem:[%s794 + $0x38] sm:$0xff]
      %v1155 = vld [vmem:[%s794 + $0x48] sm:$0xff]
      %v1156 = vld [vmem:[%s794 + $0x50] sm:$0xff]
      %v1157 = vld [vmem:[%s794 + $0x60] sm:$0xff]
      %v1158 = vld [vmem:[%s794 + $0x68] sm:$0xff]
      %v1159 = vld [vmem:[%s794 + $0x78] sm:$0xff]
      %v1160 = vld [vmem:[%s794 + $0x80] sm:$0xff]
      %v1161 = vld [vmem:[%s794 + $0x90] sm:$0xff]
      %v1162 = vld [vmem:[%s794 + $0x98] sm:$0xff]
      %v1163 = vld [vmem:[%s794 + $0xa8] sm:$0xff]
      %v1164 = vld [vmem:[%s794 + $0xb0] sm:$0xff]
      %v1165 = vld [vmem:[%s794 + $0xc0] sm:$0xff]
      %v1166 = vld [vmem:[%s794 + $0xc8] sm:$0xff]
      %v1167 = vld [vmem:[%s794 + $0xd8] sm:$0xff]
      %v1168 = vld [vmem:[%s794 + $0xe0] sm:$0xff]
      %v1169 = vld [vmem:[%s794 + $0xf0] sm:$0xff]
      %v1170 = vld [vmem:[%s794 + $0xf8] sm:$0xff]
      %v1171 = vld [vmem:[%s794 + $0x108] sm:$0xff]
      %v1172 = vld [vmem:[%s794 + $0x110] sm:$0xff]
      %v1173 = vld [vmem:[%s794 + $0x120] sm:$0xff]
      %v1174 = vld [vmem:[%s794 + $0x128] sm:$0xff]
      %v1175 = vld [vmem:[%s794 + $0x138] sm:$0xff]
      %v1176 = vld [vmem:[%s794 + $0x140] sm:$0xff]
      %v1177 = vld [vmem:[%s794 + $0x150] sm:$0xff]
      %v1178 = vld [vmem:[%s794 + $0x158] sm:$0xff]
      %v1179 = vld [vmem:[%s794 + $0x168] sm:$0xff]
      %v1180 = vld [vmem:[%s794 + $0x170] sm:$0xff]
      %v1181 = vpack.c.bf16 %v1150, %v1149
      %v1182 = vpack.c.bf16 %v1152, %v1151
      %v1183 = vpack.c.bf16 %v1154, %v1153
      %v1184 = vpack.c.bf16 %v1156, %v1155
      %v1185 = vpack.c.bf16 %v1158, %v1157
      %v1186 = vpack.c.bf16 %v1160, %v1159
      %v1187 = vpack.c.bf16 %v1162, %v1161
      %v1188 = vpack.c.bf16 %v1164, %v1163
      %v1189 = vpack.c.bf16 %v1166, %v1165
      %v1190 = vpack.c.bf16 %v1168, %v1167
      %v1191 = vpack.c.bf16 %v1170, %v1169
      %v1192 = vpack.c.bf16 %v1172, %v1171
      %v1193 = vpack.c.bf16 %v1174, %v1173
      %v1194 = vpack.c.bf16 %v1176, %v1175
      %v1195 = vpack.c.bf16 %v1178, %v1177
      %v1196 = vpack.c.bf16 %v1180, %v1179
      %1213 = vrot.lane.b32.xlu0 %v1181, 12
      %v1214 = vpop.permute.xlu0 %1213
      %1215 = vrot.lane.b32.xlu0 %v1182, 12
      %v1216 = vpop.permute.xlu0 %1215
      %1217 = vrot.lane.b32.xlu0 %v1183, 12
      %v1218 = vpop.permute.xlu0 %1217
      %1219 = vrot.lane.b32.xlu0 %v1184, 12
      %v1220 = vpop.permute.xlu0 %1219
      %1221 = vrot.lane.b32.xlu0 %v1185, 12
      %v1222 = vpop.permute.xlu0 %1221
      %1223 = vrot.lane.b32.xlu0 %v1186, 12
      %v1224 = vpop.permute.xlu0 %1223
      %1225 = vrot.lane.b32.xlu0 %v1187, 12
      %v1226 = vpop.permute.xlu0 %1225
      %1227 = vrot.lane.b32.xlu0 %v1188, 12
      %v1228 = vpop.permute.xlu0 %1227
      %1229 = vrot.lane.b32.xlu0 %v1189, 12
      %v1230 = vpop.permute.xlu0 %1229
      %1231 = vrot.lane.b32.xlu0 %v1190, 12
      %v1232 = vpop.permute.xlu0 %1231
      %1233 = vrot.lane.b32.xlu0 %v1191, 12
      %v1234 = vpop.permute.xlu0 %1233
      %1235 = vrot.lane.b32.xlu0 %v1192, 12
      %v1236 = vpop.permute.xlu0 %1235
      %1237 = vrot.lane.b32.xlu0 %v1193, 12
      %v1238 = vpop.permute.xlu0 %1237
      %1239 = vrot.lane.b32.xlu0 %v1194, 12
      %v1240 = vpop.permute.xlu0 %1239
      %1241 = vrot.lane.b32.xlu0 %v1195, 12
      %v1242 = vpop.permute.xlu0 %1241
      %1243 = vrot.lane.b32.xlu0 %v1196, 12
      %v1244 = vpop.permute.xlu0 %1243
      %vm1261 = vcmask 130144
      %1262 = vst.msk [vmem:[#allocation3] sm:$0xff] %vm1261, %v1214
      %1263 = vst.msk [vmem:[#allocation3 + $0x8] sm:$0xff] %vm1261, %v1216
      %1264 = vst.msk [vmem:[#allocation3 + $0x10] sm:$0xff] %vm1261, %v1218
      %1265 = vst.msk [vmem:[#allocation3 + $0x18] sm:$0xff] %vm1261, %v1220
      %1266 = vst.msk [vmem:[#allocation3 + $0x20] sm:$0xff] %vm1261, %v1222
      %1267 = vst.msk [vmem:[#allocation3 + $0x28] sm:$0xff] %vm1261, %v1224
      %1268 = vst.msk [vmem:[#allocation3 + $0x30] sm:$0xff] %vm1261, %v1226
      %1269 = vst.msk [vmem:[#allocation3 + $0x38] sm:$0xff] %vm1261, %v1228
      %1270 = vst.msk [vmem:[#allocation3 + $0x40] sm:$0xff] %vm1261, %v1230
      %1271 = vst.msk [vmem:[#allocation3 + $0x48] sm:$0xff] %vm1261, %v1232
      %1272 = vst.msk [vmem:[#allocation3 + $0x50] sm:$0xff] %vm1261, %v1234
      %1273 = vst.msk [vmem:[#allocation3 + $0x58] sm:$0xff] %vm1261, %v1236
      %1274 = vst.msk [vmem:[#allocation3 + $0x60] sm:$0xff] %vm1261, %v1238
      %1275 = vst.msk [vmem:[#allocation3 + $0x68] sm:$0xff] %vm1261, %v1240
      %1276 = vst.msk [vmem:[#allocation3 + $0x70] sm:$0xff] %vm1261, %v1242
      %1277 = vst.msk [vmem:[#allocation3 + $0x78] sm:$0xff] %vm1261, %v1244
      %v1278 = vld [vmem:[%s794 + $0x1] sm:$0xff]
      %v1279 = vld [vmem:[%s794 + $0x9] sm:$0xff]
      %v1280 = vld [vmem:[%s794 + $0x19] sm:$0xff]
      %v1281 = vld [vmem:[%s794 + $0x21] sm:$0xff]
      %v1282 = vld [vmem:[%s794 + $0x31] sm:$0xff]
      %v1283 = vld [vmem:[%s794 + $0x39] sm:$0xff]
      %v1284 = vld [vmem:[%s794 + $0x49] sm:$0xff]
      %v1285 = vld [vmem:[%s794 + $0x51] sm:$0xff]
      %v1286 = vld [vmem:[%s794 + $0x61] sm:$0xff]
      %v1287 = vld [vmem:[%s794 + $0x69] sm:$0xff]
      %v1288 = vld [vmem:[%s794 + $0x79] sm:$0xff]
      %v1289 = vld [vmem:[%s794 + $0x81] sm:$0xff]
      %v1290 = vld [vmem:[%s794 + $0x91] sm:$0xff]
      %v1291 = vld [vmem:[%s794 + $0x99] sm:$0xff]
      %v1292 = vld [vmem:[%s794 + $0xa9] sm:$0xff]
      %v1293 = vld [vmem:[%s794 + $0xb1] sm:$0xff]
      %v1294 = vld [vmem:[%s794 + $0xc1] sm:$0xff]
      %v1295 = vld [vmem:[%s794 + $0xc9] sm:$0xff]
      %v1296 = vld [vmem:[%s794 + $0xd9] sm:$0xff]
      %v1297 = vld [vmem:[%s794 + $0xe1] sm:$0xff]
      %v1298 = vld [vmem:[%s794 + $0xf1] sm:$0xff]
      %v1299 = vld [vmem:[%s794 + $0xf9] sm:$0xff]
      %v1300 = vld [vmem:[%s794 + $0x109] sm:$0xff]
      %v1301 = vld [vmem:[%s794 + $0x111] sm:$0xff]
      %v1302 = vld [vmem:[%s794 + $0x121] sm:$0xff]
      %v1303 = vld [vmem:[%s794 + $0x129] sm:$0xff]
      %v1304 = vld [vmem:[%s794 + $0x139] sm:$0xff]
      %v1305 = vld [vmem:[%s794 + $0x141] sm:$0xff]
      %v1306 = vld [vmem:[%s794 + $0x151] sm:$0xff]
      %v1307 = vld [vmem:[%s794 + $0x159] sm:$0xff]
      %v1308 = vld [vmem:[%s794 + $0x169] sm:$0xff]
      %v1309 = vld [vmem:[%s794 + $0x171] sm:$0xff]
      %v1310 = vpack.c.bf16 %v1279, %v1278
      %v1311 = vpack.c.bf16 %v1281, %v1280
      %v1312 = vpack.c.bf16 %v1283, %v1282
      %v1313 = vpack.c.bf16 %v1285, %v1284
      %v1314 = vpack.c.bf16 %v1287, %v1286
      %v1315 = vpack.c.bf16 %v1289, %v1288
      %v1316 = vpack.c.bf16 %v1291, %v1290
      %v1317 = vpack.c.bf16 %v1293, %v1292
      %v1318 = vpack.c.bf16 %v1295, %v1294
      %v1319 = vpack.c.bf16 %v1297, %v1296
      %v1320 = vpack.c.bf16 %v1299, %v1298
      %v1321 = vpack.c.bf16 %v1301, %v1300
      %v1322 = vpack.c.bf16 %v1303, %v1302
      %v1323 = vpack.c.bf16 %v1305, %v1304
      %v1324 = vpack.c.bf16 %v1307, %v1306
      %v1325 = vpack.c.bf16 %v1309, %v1308
      %1342 = vrot.lane.b32.xlu0 %v1310, 16
      %v1343 = vpop.permute.xlu0 %1342
      %1344 = vrot.lane.b32.xlu0 %v1311, 16
      %v1345 = vpop.permute.xlu0 %1344
      %1346 = vrot.lane.b32.xlu0 %v1312, 16
      %v1347 = vpop.permute.xlu0 %1346
      %1348 = vrot.lane.b32.xlu0 %v1313, 16
      %v1349 = vpop.permute.xlu0 %1348
      %1350 = vrot.lane.b32.xlu0 %v1314, 16
      %v1351 = vpop.permute.xlu0 %1350
      %1352 = vrot.lane.b32.xlu0 %v1315, 16
      %v1353 = vpop.permute.xlu0 %1352
      %1354 = vrot.lane.b32.xlu0 %v1316, 16
      %v1355 = vpop.permute.xlu0 %1354
      %1356 = vrot.lane.b32.xlu0 %v1317, 16
      %v1357 = vpop.permute.xlu0 %1356
      %1358 = vrot.lane.b32.xlu0 %v1318, 16
      %v1359 = vpop.permute.xlu0 %1358
      %1360 = vrot.lane.b32.xlu0 %v1319, 16
      %v1361 = vpop.permute.xlu0 %1360
      %1362 = vrot.lane.b32.xlu0 %v1320, 16
      %v1363 = vpop.permute.xlu0 %1362
      %1364 = vrot.lane.b32.xlu0 %v1321, 16
      %v1365 = vpop.permute.xlu0 %1364
      %1366 = vrot.lane.b32.xlu0 %v1322, 16
      %v1367 = vpop.permute.xlu0 %1366
      %1368 = vrot.lane.b32.xlu0 %v1323, 16
      %v1369 = vpop.permute.xlu0 %1368
      %1370 = vrot.lane.b32.xlu0 %v1324, 16
      %v1371 = vpop.permute.xlu0 %1370
      %1372 = vrot.lane.b32.xlu0 %v1325, 16
      %v1373 = vpop.permute.xlu0 %1372
      %vm1390 = vcmask 162944
      %1391 = vst.msk [vmem:[#allocation3] sm:$0xff] %vm1390, %v1343
      %1392 = vst.msk [vmem:[#allocation3 + $0x8] sm:$0xff] %vm1390, %v1345
      %1393 = vst.msk [vmem:[#allocation3 + $0x10] sm:$0xff] %vm1390, %v1347
      %1394 = vst.msk [vmem:[#allocation3 + $0x18] sm:$0xff] %vm1390, %v1349
      %1395 = vst.msk [vmem:[#allocation3 + $0x20] sm:$0xff] %vm1390, %v1351
      %1396 = vst.msk [vmem:[#allocation3 + $0x28] sm:$0xff] %vm1390, %v1353
      %1397 = vst.msk [vmem:[#allocation3 + $0x30] sm:$0xff] %vm1390, %v1355
      %1398 = vst.msk [vmem:[#allocation3 + $0x38] sm:$0xff] %vm1390, %v1357
      %1399 = vst.msk [vmem:[#allocation3 + $0x40] sm:$0xff] %vm1390, %v1359
      %1400 = vst.msk [vmem:[#allocation3 + $0x48] sm:$0xff] %vm1390, %v1361
      %1401 = vst.msk [vmem:[#allocation3 + $0x50] sm:$0xff] %vm1390, %v1363
      %1402 = vst.msk [vmem:[#allocation3 + $0x58] sm:$0xff] %vm1390, %v1365
      %1403 = vst.msk [vmem:[#allocation3 + $0x60] sm:$0xff] %vm1390, %v1367
      %1404 = vst.msk [vmem:[#allocation3 + $0x68] sm:$0xff] %vm1390, %v1369
      %1405 = vst.msk [vmem:[#allocation3 + $0x70] sm:$0xff] %vm1390, %v1371
      %1406 = vst.msk [vmem:[#allocation3 + $0x78] sm:$0xff] %vm1390, %v1373
      %v1407 = vld [vmem:[%s794 + $0x2] sm:$0xff]
      %v1408 = vld [vmem:[%s794 + $0xa] sm:$0xff]
      %v1409 = vld [vmem:[%s794 + $0x1a] sm:$0xff]
      %v1410 = vld [vmem:[%s794 + $0x22] sm:$0xff]
      %v1411 = vld [vmem:[%s794 + $0x32] sm:$0xff]
      %v1412 = vld [vmem:[%s794 + $0x3a] sm:$0xff]
      %v1413 = vld [vmem:[%s794 + $0x4a] sm:$0xff]
      %v1414 = vld [vmem:[%s794 + $0x52] sm:$0xff]
      %v1415 = vld [vmem:[%s794 + $0x62] sm:$0xff]
      %v1416 = vld [vmem:[%s794 + $0x6a] sm:$0xff]
      %v1417 = vld [vmem:[%s794 + $0x7a] sm:$0xff]
      %v1418 = vld [vmem:[%s794 + $0x82] sm:$0xff]
      %v1419 = vld [vmem:[%s794 + $0x92] sm:$0xff]
      %v1420 = vld [vmem:[%s794 + $0x9a] sm:$0xff]
      %v1421 = vld [vmem:[%s794 + $0xaa] sm:$0xff]
      %v1422 = vld [vmem:[%s794 + $0xb2] sm:$0xff]
      %v1423 = vld [vmem:[%s794 + $0xc2] sm:$0xff]
      %v1424 = vld [vmem:[%s794 + $0xca] sm:$0xff]
      %v1425 = vld [vmem:[%s794 + $0xda] sm:$0xff]
      %v1426 = vld [vmem:[%s794 + $0xe2] sm:$0xff]
      %v1427 = vld [vmem:[%s794 + $0xf2] sm:$0xff]
      %v1428 = vld [vmem:[%s794 + $0xfa] sm:$0xff]
      %v1429 = vld [vmem:[%s794 + $0x10a] sm:$0xff]
      %v1430 = vld [vmem:[%s794 + $0x112] sm:$0xff]
      %v1431 = vld [vmem:[%s794 + $0x122] sm:$0xff]
      %v1432 = vld [vmem:[%s794 + $0x12a] sm:$0xff]
      %v1433 = vld [vmem:[%s794 + $0x13a] sm:$0xff]
      %v1434 = vld [vmem:[%s794 + $0x142] sm:$0xff]
      %v1435 = vld [vmem:[%s794 + $0x152] sm:$0xff]
      %v1436 = vld [vmem:[%s794 + $0x15a] sm:$0xff]
      %v1437 = vld [vmem:[%s794 + $0x16a] sm:$0xff]
      %v1438 = vld [vmem:[%s794 + $0x172] sm:$0xff]
      %v1439 = vpack.c.bf16 %v1408, %v1407
      %v1440 = vpack.c.bf16 %v1410, %v1409
      %v1441 = vpack.c.bf16 %v1412, %v1411
      %v1442 = vpack.c.bf16 %v1414, %v1413
      %v1443 = vpack.c.bf16 %v1416, %v1415
      %v1444 = vpack.c.bf16 %v1418, %v1417
      %v1445 = vpack.c.bf16 %v1420, %v1419
      %v1446 = vpack.c.bf16 %v1422, %v1421
      %v1447 = vpack.c.bf16 %v1424, %v1423
      %v1448 = vpack.c.bf16 %v1426, %v1425
      %v1449 = vpack.c.bf16 %v1428, %v1427
      %v1450 = vpack.c.bf16 %v1430, %v1429
      %v1451 = vpack.c.bf16 %v1432, %v1431
      %v1452 = vpack.c.bf16 %v1434, %v1433
      %v1453 = vpack.c.bf16 %v1436, %v1435
      %v1454 = vpack.c.bf16 %v1438, %v1437
      %1471 = vrot.lane.b32.xlu0 %v1439, 20
      %v1472 = vpop.permute.xlu0 %1471
      %1473 = vrot.lane.b32.xlu0 %v1440, 20
      %v1474 = vpop.permute.xlu0 %1473
      %1475 = vrot.lane.b32.xlu0 %v1441, 20
      %v1476 = vpop.permute.xlu0 %1475
      %1477 = vrot.lane.b32.xlu0 %v1442, 20
      %v1478 = vpop.permute.xlu0 %1477
      %1479 = vrot.lane.b32.xlu0 %v1443, 20
      %v1480 = vpop.permute.xlu0 %1479
      %1481 = vrot.lane.b32.xlu0 %v1444, 20
      %v1482 = vpop.permute.xlu0 %1481
      %1483 = vrot.lane.b32.xlu0 %v1445, 20
      %v1484 = vpop.permute.xlu0 %1483
      %1485 = vrot.lane.b32.xlu0 %v1446, 20
      %v1486 = vpop.permute.xlu0 %1485
      %1487 = vrot.lane.b32.xlu0 %v1447, 20
      %v1488 = vpop.permute.xlu0 %1487
      %1489 = vrot.lane.b32.xlu0 %v1448, 20
      %v1490 = vpop.permute.xlu0 %1489
      %1491 = vrot.lane.b32.xlu0 %v1449, 20
      %v1492 = vpop.permute.xlu0 %1491
      %1493 = vrot.lane.b32.xlu0 %v1450, 20
      %v1494 = vpop.permute.xlu0 %1493
      %1495 = vrot.lane.b32.xlu0 %v1451, 20
      %v1496 = vpop.permute.xlu0 %1495
      %1497 = vrot.lane.b32.xlu0 %v1452, 20
      %v1498 = vpop.permute.xlu0 %1497
      %1499 = vrot.lane.b32.xlu0 %v1453, 20
      %v1500 = vpop.permute.xlu0 %1499
      %1501 = vrot.lane.b32.xlu0 %v1454, 20
      %v1502 = vpop.permute.xlu0 %1501
      %vm1519 = vcmask 195744
      %1520 = vst.msk [vmem:[#allocation3] sm:$0xff] %vm1519, %v1472
      %1521 = vst.msk [vmem:[#allocation3 + $0x8] sm:$0xff] %vm1519, %v1474
      %1522 = vst.msk [vmem:[#allocation3 + $0x10] sm:$0xff] %vm1519, %v1476
      %1523 = vst.msk [vmem:[#allocation3 + $0x18] sm:$0xff] %vm1519, %v1478
      %1524 = vst.msk [vmem:[#allocation3 + $0x20] sm:$0xff] %vm1519, %v1480
      %1525 = vst.msk [vmem:[#allocation3 + $0x28] sm:$0xff] %vm1519, %v1482
      %1526 = vst.msk [vmem:[#allocation3 + $0x30] sm:$0xff] %vm1519, %v1484
      %1527 = vst.msk [vmem:[#allocation3 + $0x38] sm:$0xff] %vm1519, %v1486
      %1528 = vst.msk [vmem:[#allocation3 + $0x40] sm:$0xff] %vm1519, %v1488
      %1529 = vst.msk [vmem:[#allocation3 + $0x48] sm:$0xff] %vm1519, %v1490
      %1530 = vst.msk [vmem:[#allocation3 + $0x50] sm:$0xff] %vm1519, %v1492
      %1531 = vst.msk [vmem:[#allocation3 + $0x58] sm:$0xff] %vm1519, %v1494
      %1532 = vst.msk [vmem:[#allocation3 + $0x60] sm:$0xff] %vm1519, %v1496
      %1533 = vst.msk [vmem:[#allocation3 + $0x68] sm:$0xff] %vm1519, %v1498
      %1534 = vst.msk [vmem:[#allocation3 + $0x70] sm:$0xff] %vm1519, %v1500
      %1535 = vst.msk [vmem:[#allocation3 + $0x78] sm:$0xff] %vm1519, %v1502
      %s1536 = scalar_lea.vmem [#allocation2], 48
      %v1537 = vld [vmem:[%s1536] sm:$0xff]
      %v1538 = vld [vmem:[%s1536 + $0x8] sm:$0xff]
      %v1539 = vld [vmem:[%s1536 + $0x18] sm:$0xff]
      %v1540 = vld [vmem:[%s1536 + $0x20] sm:$0xff]
      %v1541 = vld [vmem:[%s1536 + $0x30] sm:$0xff]
      %v1542 = vld [vmem:[%s1536 + $0x38] sm:$0xff]
      %v1543 = vld [vmem:[%s1536 + $0x48] sm:$0xff]
      %v1544 = vld [vmem:[%s1536 + $0x50] sm:$0xff]
      %v1545 = vld [vmem:[%s1536 + $0x60] sm:$0xff]
      %v1546 = vld [vmem:[%s1536 + $0x68] sm:$0xff]
      %v1547 = vld [vmem:[%s1536 + $0x78] sm:$0xff]
      %v1548 = vld [vmem:[%s1536 + $0x80] sm:$0xff]
      %v1549 = vld [vmem:[%s1536 + $0x90] sm:$0xff]
      %v1550 = vld [vmem:[%s1536 + $0x98] sm:$0xff]
      %v1551 = vld [vmem:[%s1536 + $0xa8] sm:$0xff]
      %v1552 = vld [vmem:[%s1536 + $0xb0] sm:$0xff]
      %v1553 = vld [vmem:[%s1536 + $0xc0] sm:$0xff]
      %v1554 = vld [vmem:[%s1536 + $0xc8] sm:$0xff]
      %v1555 = vld [vmem:[%s1536 + $0xd8] sm:$0xff]
      %v1556 = vld [vmem:[%s1536 + $0xe0] sm:$0xff]
      %v1557 = vld [vmem:[%s1536 + $0xf0] sm:$0xff]
      %v1558 = vld [vmem:[%s1536 + $0xf8] sm:$0xff]
      %v1559 = vld [vmem:[%s1536 + $0x108] sm:$0xff]
      %v1560 = vld [vmem:[%s1536 + $0x110] sm:$0xff]
      %v1561 = vld [vmem:[%s1536 + $0x120] sm:$0xff]
      %v1562 = vld [vmem:[%s1536 + $0x128] sm:$0xff]
      %v1563 = vld [vmem:[%s1536 + $0x138] sm:$0xff]
      %v1564 = vld [vmem:[%s1536 + $0x140] sm:$0xff]
      %v1565 = vld [vmem:[%s1536 + $0x150] sm:$0xff]
      %v1566 = vld [vmem:[%s1536 + $0x158] sm:$0xff]
      %v1567 = vld [vmem:[%s1536 + $0x168] sm:$0xff]
      %v1568 = vld [vmem:[%s1536 + $0x170] sm:$0xff]
      %v1569 = vpack.c.bf16 %v1538, %v1537
      %v1570 = vpack.c.bf16 %v1540, %v1539
      %v1571 = vpack.c.bf16 %v1542, %v1541
      %v1572 = vpack.c.bf16 %v1544, %v1543
      %v1573 = vpack.c.bf16 %v1546, %v1545
      %v1574 = vpack.c.bf16 %v1548, %v1547
      %v1575 = vpack.c.bf16 %v1550, %v1549
      %v1576 = vpack.c.bf16 %v1552, %v1551
      %v1577 = vpack.c.bf16 %v1554, %v1553
      %v1578 = vpack.c.bf16 %v1556, %v1555
      %v1579 = vpack.c.bf16 %v1558, %v1557
      %v1580 = vpack.c.bf16 %v1560, %v1559
      %v1581 = vpack.c.bf16 %v1562, %v1561
      %v1582 = vpack.c.bf16 %v1564, %v1563
      %v1583 = vpack.c.bf16 %v1566, %v1565
      %v1584 = vpack.c.bf16 %v1568, %v1567
      %1601 = vrot.lane.b32.xlu0 %v1569, 24
      %v1602 = vpop.permute.xlu0 %1601
      %1603 = vrot.lane.b32.xlu0 %v1570, 24
      %v1604 = vpop.permute.xlu0 %1603
      %1605 = vrot.lane.b32.xlu0 %v1571, 24
      %v1606 = vpop.permute.xlu0 %1605
      %1607 = vrot.lane.b32.xlu0 %v1572, 24
      %v1608 = vpop.permute.xlu0 %1607
      %1609 = vrot.lane.b32.xlu0 %v1573, 24
      %v1610 = vpop.permute.xlu0 %1609
      %1611 = vrot.lane.b32.xlu0 %v1574, 24
      %v1612 = vpop.permute.xlu0 %1611
      %1613 = vrot.lane.b32.xlu0 %v1575, 24
      %v1614 = vpop.permute.xlu0 %1613
      %1615 = vrot.lane.b32.xlu0 %v1576, 24
      %v1616 = vpop.permute.xlu0 %1615
      %1617 = vrot.lane.b32.xlu0 %v1577, 24
      %v1618 = vpop.permute.xlu0 %1617
      %1619 = vrot.lane.b32.xlu0 %v1578, 24
      %v1620 = vpop.permute.xlu0 %1619
      %1621 = vrot.lane.b32.xlu0 %v1579, 24
      %v1622 = vpop.permute.xlu0 %1621
      %1623 = vrot.lane.b32.xlu0 %v1580, 24
      %v1624 = vpop.permute.xlu0 %1623
      %1625 = vrot.lane.b32.xlu0 %v1581, 24
      %v1626 = vpop.permute.xlu0 %1625
      %1627 = vrot.lane.b32.xlu0 %v1582, 24
      %v1628 = vpop.permute.xlu0 %1627
      %1629 = vrot.lane.b32.xlu0 %v1583, 24
      %v1630 = vpop.permute.xlu0 %1629
      %1631 = vrot.lane.b32.xlu0 %v1584, 24
      %v1632 = vpop.permute.xlu0 %1631
      %vm1649 = vcmask 228544
      %1650 = vst.msk [vmem:[#allocation3] sm:$0xff] %vm1649, %v1602
      %1651 = vst.msk [vmem:[#allocation3 + $0x8] sm:$0xff] %vm1649, %v1604
      %1652 = vst.msk [vmem:[#allocation3 + $0x10] sm:$0xff] %vm1649, %v1606
      %1653 = vst.msk [vmem:[#allocation3 + $0x18] sm:$0xff] %vm1649, %v1608
      %1654 = vst.msk [vmem:[#allocation3 + $0x20] sm:$0xff] %vm1649, %v1610
      %1655 = vst.msk [vmem:[#allocation3 + $0x28] sm:$0xff] %vm1649, %v1612
      %1656 = vst.msk [vmem:[#allocation3 + $0x30] sm:$0xff] %vm1649, %v1614
      %1657 = vst.msk [vmem:[#allocation3 + $0x38] sm:$0xff] %vm1649, %v1616
      %1658 = vst.msk [vmem:[#allocation3 + $0x40] sm:$0xff] %vm1649, %v1618
      %1659 = vst.msk [vmem:[#allocation3 + $0x48] sm:$0xff] %vm1649, %v1620
      %1660 = vst.msk [vmem:[#allocation3 + $0x50] sm:$0xff] %vm1649, %v1622
      %1661 = vst.msk [vmem:[#allocation3 + $0x58] sm:$0xff] %vm1649, %v1624
      %1662 = vst.msk [vmem:[#allocation3 + $0x60] sm:$0xff] %vm1649, %v1626
      %1663 = vst.msk [vmem:[#allocation3 + $0x68] sm:$0xff] %vm1649, %v1628
      %1664 = vst.msk [vmem:[#allocation3 + $0x70] sm:$0xff] %vm1649, %v1630
      %1665 = vst.msk [vmem:[#allocation3 + $0x78] sm:$0xff] %vm1649, %v1632
      %v1666 = vld [vmem:[%s1536 + $0x1] sm:$0xff]
      %v1667 = vld [vmem:[%s1536 + $0x9] sm:$0xff]
      %v1668 = vld [vmem:[%s1536 + $0x19] sm:$0xff]
      %v1669 = vld [vmem:[%s1536 + $0x21] sm:$0xff]
      %v1670 = vld [vmem:[%s1536 + $0x31] sm:$0xff]
      %v1671 = vld [vmem:[%s1536 + $0x39] sm:$0xff]
      %v1672 = vld [vmem:[%s1536 + $0x49] sm:$0xff]
      %v1673 = vld [vmem:[%s1536 + $0x51] sm:$0xff]
      %v1674 = vld [vmem:[%s1536 + $0x61] sm:$0xff]
      %v1675 = vld [vmem:[%s1536 + $0x69] sm:$0xff]
      %v1676 = vld [vmem:[%s1536 + $0x79] sm:$0xff]
      %v1677 = vld [vmem:[%s1536 + $0x81] sm:$0xff]
      %v1678 = vld [vmem:[%s1536 + $0x91] sm:$0xff]
      %v1679 = vld [vmem:[%s1536 + $0x99] sm:$0xff]
      %v1680 = vld [vmem:[%s1536 + $0xa9] sm:$0xff]
      %v1681 = vld [vmem:[%s1536 + $0xb1] sm:$0xff]
      %v1682 = vld [vmem:[%s1536 + $0xc1] sm:$0xff]
      %v1683 = vld [vmem:[%s1536 + $0xc9] sm:$0xff]
      %v1684 = vld [vmem:[%s1536 + $0xd9] sm:$0xff]
      %v1685 = vld [vmem:[%s1536 + $0xe1] sm:$0xff]
      %v1686 = vld [vmem:[%s1536 + $0xf1] sm:$0xff]
      %v1687 = vld [vmem:[%s1536 + $0xf9] sm:$0xff]
      %v1688 = vld [vmem:[%s1536 + $0x109] sm:$0xff]
      %v1689 = vld [vmem:[%s1536 + $0x111] sm:$0xff]
      %v1690 = vld [vmem:[%s1536 + $0x121] sm:$0xff]
      %v1691 = vld [vmem:[%s1536 + $0x129] sm:$0xff]
      %v1692 = vld [vmem:[%s1536 + $0x139] sm:$0xff]
      %v1693 = vld [vmem:[%s1536 + $0x141] sm:$0xff]
      %v1694 = vld [vmem:[%s1536 + $0x151] sm:$0xff]
      %v1695 = vld [vmem:[%s1536 + $0x159] sm:$0xff]
      %v1696 = vld [vmem:[%s1536 + $0x169] sm:$0xff]
      %v1697 = vld [vmem:[%s1536 + $0x171] sm:$0xff]
      %v1698 = vpack.c.bf16 %v1667, %v1666
      %v1699 = vpack.c.bf16 %v1669, %v1668
      %v1700 = vpack.c.bf16 %v1671, %v1670
      %v1701 = vpack.c.bf16 %v1673, %v1672
      %v1702 = vpack.c.bf16 %v1675, %v1674
      %v1703 = vpack.c.bf16 %v1677, %v1676
      %v1704 = vpack.c.bf16 %v1679, %v1678
      %v1705 = vpack.c.bf16 %v1681, %v1680
      %v1706 = vpack.c.bf16 %v1683, %v1682
      %v1707 = vpack.c.bf16 %v1685, %v1684
      %v1708 = vpack.c.bf16 %v1687, %v1686
      %v1709 = vpack.c.bf16 %v1689, %v1688
      %v1710 = vpack.c.bf16 %v1691, %v1690
      %v1711 = vpack.c.bf16 %v1693, %v1692
      %v1712 = vpack.c.bf16 %v1695, %v1694
      %v1713 = vpack.c.bf16 %v1697, %v1696
      %1730 = vrot.lane.b32.xlu0 %v1698, 28
      %v1731 = vpop.permute.xlu0 %1730
      %1732 = vrot.lane.b32.xlu0 %v1699, 28
      %v1733 = vpop.permute.xlu0 %1732
      %1734 = vrot.lane.b32.xlu0 %v1700, 28
      %v1735 = vpop.permute.xlu0 %1734
      %1736 = vrot.lane.b32.xlu0 %v1701, 28
      %v1737 = vpop.permute.xlu0 %1736
      %1738 = vrot.lane.b32.xlu0 %v1702, 28
      %v1739 = vpop.permute.xlu0 %1738
      %1740 = vrot.lane.b32.xlu0 %v1703, 28
      %v1741 = vpop.permute.xlu0 %1740
      %1742 = vrot.lane.b32.xlu0 %v1704, 28
      %v1743 = vpop.permute.xlu0 %1742
      %1744 = vrot.lane.b32.xlu0 %v1705, 28
      %v1745 = vpop.permute.xlu0 %1744
      %1746 = vrot.lane.b32.xlu0 %v1706, 28
      %v1747 = vpop.permute.xlu0 %1746
      %1748 = vrot.lane.b32.xlu0 %v1707, 28
      %v1749 = vpop.permute.xlu0 %1748
      %1750 = vrot.lane.b32.xlu0 %v1708, 28
      %v1751 = vpop.permute.xlu0 %1750
      %1752 = vrot.lane.b32.xlu0 %v1709, 28
      %v1753 = vpop.permute.xlu0 %1752
      %1754 = vrot.lane.b32.xlu0 %v1710, 28
      %v1755 = vpop.permute.xlu0 %1754
      %1756 = vrot.lane.b32.xlu0 %v1711, 28
      %v1757 = vpop.permute.xlu0 %1756
      %1758 = vrot.lane.b32.xlu0 %v1712, 28
      %v1759 = vpop.permute.xlu0 %1758
      %1760 = vrot.lane.b32.xlu0 %v1713, 28
      %v1761 = vpop.permute.xlu0 %1760
      %vm1778 = vcmask 261344
      %1779 = vst.msk [vmem:[#allocation3] sm:$0xff] %vm1778, %v1731
      %1780 = vst.msk [vmem:[#allocation3 + $0x8] sm:$0xff] %vm1778, %v1733
      %1781 = vst.msk [vmem:[#allocation3 + $0x10] sm:$0xff] %vm1778, %v1735
      %1782 = vst.msk [vmem:[#allocation3 + $0x18] sm:$0xff] %vm1778, %v1737
      %1783 = vst.msk [vmem:[#allocation3 + $0x20] sm:$0xff] %vm1778, %v1739
      %1784 = vst.msk [vmem:[#allocation3 + $0x28] sm:$0xff] %vm1778, %v1741
      %1785 = vst.msk [vmem:[#allocation3 + $0x30] sm:$0xff] %vm1778, %v1743
      %1786 = vst.msk [vmem:[#allocation3 + $0x38] sm:$0xff] %vm1778, %v1745
      %1787 = vst.msk [vmem:[#allocation3 + $0x40] sm:$0xff] %vm1778, %v1747
      %1788 = vst.msk [vmem:[#allocation3 + $0x48] sm:$0xff] %vm1778, %v1749
      %1789 = vst.msk [vmem:[#allocation3 + $0x50] sm:$0xff] %vm1778, %v1751
      %1790 = vst.msk [vmem:[#allocation3 + $0x58] sm:$0xff] %vm1778, %v1753
      %1791 = vst.msk [vmem:[#allocation3 + $0x60] sm:$0xff] %vm1778, %v1755
      %1792 = vst.msk [vmem:[#allocation3 + $0x68] sm:$0xff] %vm1778, %v1757
      %1793 = vst.msk [vmem:[#allocation3 + $0x70] sm:$0xff] %vm1778, %v1759
      %1794 = vst.msk [vmem:[#allocation3 + $0x78] sm:$0xff] %vm1778, %v1761
      %v1795 = vld [vmem:[%s1536 + $0x2] sm:$0xff]
      %v1796 = vld [vmem:[%s1536 + $0xa] sm:$0xff]
      %v1797 = vld [vmem:[%s1536 + $0x1a] sm:$0xff]
      %v1798 = vld [vmem:[%s1536 + $0x22] sm:$0xff]
      %v1799 = vld [vmem:[%s1536 + $0x32] sm:$0xff]
      %v1800 = vld [vmem:[%s1536 + $0x3a] sm:$0xff]
      %v1801 = vld [vmem:[%s1536 + $0x4a] sm:$0xff]
      %v1802 = vld [vmem:[%s1536 + $0x52] sm:$0xff]
      %v1803 = vld [vmem:[%s1536 + $0x62] sm:$0xff]
      %v1804 = vld [vmem:[%s1536 + $0x6a] sm:$0xff]
      %v1805 = vld [vmem:[%s1536 + $0x7a] sm:$0xff]
      %v1806 = vld [vmem:[%s1536 + $0x82] sm:$0xff]
      %v1807 = vld [vmem:[%s1536 + $0x92] sm:$0xff]
      %v1808 = vld [vmem:[%s1536 + $0x9a] sm:$0xff]
      %v1809 = vld [vmem:[%s1536 + $0xaa] sm:$0xff]
      %v1810 = vld [vmem:[%s1536 + $0xb2] sm:$0xff]
      %v1811 = vld [vmem:[%s1536 + $0xc2] sm:$0xff]
      %v1812 = vld [vmem:[%s1536 + $0xca] sm:$0xff]
      %v1813 = vld [vmem:[%s1536 + $0xda] sm:$0xff]
      %v1814 = vld [vmem:[%s1536 + $0xe2] sm:$0xff]
      %v1815 = vld [vmem:[%s1536 + $0xf2] sm:$0xff]
      %v1816 = vld [vmem:[%s1536 + $0xfa] sm:$0xff]
      %v1817 = vld [vmem:[%s1536 + $0x10a] sm:$0xff]
      %v1818 = vld [vmem:[%s1536 + $0x112] sm:$0xff]
      %v1819 = vld [vmem:[%s1536 + $0x122] sm:$0xff]
      %v1820 = vld [vmem:[%s1536 + $0x12a] sm:$0xff]
      %v1821 = vld [vmem:[%s1536 + $0x13a] sm:$0xff]
      %v1822 = vld [vmem:[%s1536 + $0x142] sm:$0xff]
      %v1823 = vld [vmem:[%s1536 + $0x152] sm:$0xff]
      %v1824 = vld [vmem:[%s1536 + $0x15a] sm:$0xff]
      %v1825 = vld [vmem:[%s1536 + $0x16a] sm:$0xff]
      %v1826 = vld [vmem:[%s1536 + $0x172] sm:$0xff]
      %v1827 = vpack.c.bf16 %v1796, %v1795
      %v1828 = vpack.c.bf16 %v1798, %v1797
      %v1829 = vpack.c.bf16 %v1800, %v1799
      %v1830 = vpack.c.bf16 %v1802, %v1801
      %v1831 = vpack.c.bf16 %v1804, %v1803
      %v1832 = vpack.c.bf16 %v1806, %v1805
      %v1833 = vpack.c.bf16 %v1808, %v1807
      %v1834 = vpack.c.bf16 %v1810, %v1809
      %v1835 = vpack.c.bf16 %v1812, %v1811
      %v1836 = vpack.c.bf16 %v1814, %v1813
      %v1837 = vpack.c.bf16 %v1816, %v1815
      %v1838 = vpack.c.bf16 %v1818, %v1817
      %v1839 = vpack.c.bf16 %v1820, %v1819
      %v1840 = vpack.c.bf16 %v1822, %v1821
      %v1841 = vpack.c.bf16 %v1824, %v1823
      %v1842 = vpack.c.bf16 %v1826, %v1825
      %1859 = vrot.lane.b32.xlu0 %v1827, 32
      %v1860 = vpop.permute.xlu0 %1859
      %1861 = vrot.lane.b32.xlu0 %v1828, 32
      %v1862 = vpop.permute.xlu0 %1861
      %1863 = vrot.lane.b32.xlu0 %v1829, 32
      %v1864 = vpop.permute.xlu0 %1863
      %1865 = vrot.lane.b32.xlu0 %v1830, 32
      %v1866 = vpop.permute.xlu0 %1865
      %1867 = vrot.lane.b32.xlu0 %v1831, 32
      %v1868 = vpop.permute.xlu0 %1867
      %1869 = vrot.lane.b32.xlu0 %v1832, 32
      %v1870 = vpop.permute.xlu0 %1869
      %1871 = vrot.lane.b32.xlu0 %v1833, 32
      %v1872 = vpop.permute.xlu0 %1871
      %1873 = vrot.lane.b32.xlu0 %v1834, 32
      %v1874 = vpop.permute.xlu0 %1873
      %1875 = vrot.lane.b32.xlu0 %v1835, 32
      %v1876 = vpop.permute.xlu0 %1875
      %1877 = vrot.lane.b32.xlu0 %v1836, 32
      %v1878 = vpop.permute.xlu0 %1877
      %1879 = vrot.lane.b32.xlu0 %v1837, 32
      %v1880 = vpop.permute.xlu0 %1879
      %1881 = vrot.lane.b32.xlu0 %v1838, 32
      %v1882 = vpop.permute.xlu0 %1881
      %1883 = vrot.lane.b32.xlu0 %v1839, 32
      %v1884 = vpop.permute.xlu0 %1883
      %1885 = vrot.lane.b32.xlu0 %v1840, 32
      %v1886 = vpop.permute.xlu0 %1885
      %1887 = vrot.lane.b32.xlu0 %v1841, 32
      %v1888 = vpop.permute.xlu0 %1887
      %1889 = vrot.lane.b32.xlu0 %v1842, 32
      %v1890 = vpop.permute.xlu0 %1889
      %vm1907 = vcmask 294144
      %1908 = vst.msk [vmem:[#allocation3] sm:$0xff] %vm1907, %v1860
      %1909 = vst.msk [vmem:[#allocation3 + $0x8] sm:$0xff] %vm1907, %v1862
      %1910 = vst.msk [vmem:[#allocation3 + $0x10] sm:$0xff] %vm1907, %v1864
      %1911 = vst.msk [vmem:[#allocation3 + $0x18] sm:$0xff] %vm1907, %v1866
      %1912 = vst.msk [vmem:[#allocation3 + $0x20] sm:$0xff] %vm1907, %v1868
      %1913 = vst.msk [vmem:[#allocation3 + $0x28] sm:$0xff] %vm1907, %v1870
      %1914 = vst.msk [vmem:[#allocation3 + $0x30] sm:$0xff] %vm1907, %v1872
      %1915 = vst.msk [vmem:[#allocation3 + $0x38] sm:$0xff] %vm1907, %v1874
      %1916 = vst.msk [vmem:[#allocation3 + $0x40] sm:$0xff] %vm1907, %v1876
      %1917 = vst.msk [vmem:[#allocation3 + $0x48] sm:$0xff] %vm1907, %v1878
      %1918 = vst.msk [vmem:[#allocation3 + $0x50] sm:$0xff] %vm1907, %v1880
      %1919 = vst.msk [vmem:[#allocation3 + $0x58] sm:$0xff] %vm1907, %v1882
      %1920 = vst.msk [vmem:[#allocation3 + $0x60] sm:$0xff] %vm1907, %v1884
      %1921 = vst.msk [vmem:[#allocation3 + $0x68] sm:$0xff] %vm1907, %v1886
      %1922 = vst.msk [vmem:[#allocation3 + $0x70] sm:$0xff] %vm1907, %v1888
      %1923 = vst.msk [vmem:[#allocation3 + $0x78] sm:$0xff] %vm1907, %v1890
      %v1924 = vld [vmem:[#allocation3] sm:$0xff]
      %v1925 = vld [vmem:[#allocation3 + $0x8] sm:$0xff]
      %v1926 = vld [vmem:[#allocation3 + $0x10] sm:$0xff]
      %v1927 = vld [vmem:[#allocation3 + $0x18] sm:$0xff]
      %v1928 = vld [vmem:[#allocation3 + $0x20] sm:$0xff]
      %v1929 = vld [vmem:[#allocation3 + $0x28] sm:$0xff]
      %v1930 = vld [vmem:[#allocation3 + $0x30] sm:$0xff]
      %v1931 = vld [vmem:[#allocation3 + $0x38] sm:$0xff]
      %v1932 = vld [vmem:[#allocation3 + $0x40] sm:$0xff]
      %v1933 = vld [vmem:[#allocation3 + $0x48] sm:$0xff]
      %v1934 = vld [vmem:[#allocation3 + $0x50] sm:$0xff]
      %v1935 = vld [vmem:[#allocation3 + $0x58] sm:$0xff]
      %v1936 = vld [vmem:[#allocation3 + $0x60] sm:$0xff]
      %v1937 = vld [vmem:[#allocation3 + $0x68] sm:$0xff]
      %v1938 = vld [vmem:[#allocation3 + $0x70] sm:$0xff]
      %v1939 = vld [vmem:[#allocation3 + $0x78] sm:$0xff]
      %v1940 = vld [vmem:[%s3] sm:$0xf]
      %v1941 = vld [vmem:[%s3 + $0x4] sm:$0xf]
      %v1942 = vld [vmem:[%s3 + $0x8] sm:$0xf]
      %v1943 = vld [vmem:[%s3 + $0xc] sm:$0xf]
      %v1944 = vld [vmem:[%s3 + $0x10] sm:$0x3]
      %v1945 = vld [vmem:[%s4] sm:$0x1]
      %v1947 = vlaneseq
      %v1948 = vshrl.u32 %v1947, 7
      %v1949 = vsub.s32 0, %v1948
      %v1950 = vrot.slane %v1945, %v1949
      %v1957 = vunpack.c.l.b16 %v1940
      %v1958 = vunpack.c.l.b16 %v1941
      %v1959 = vunpack.c.l.b16 %v1942
      %v1960 = vunpack.c.l.b16 %v1943
      %v1961 = vunpack.c.l.b16 %v1944
      %v1962 = vpack.c.b16 %v1958, %v1957
      %v1963 = vpack.c.b16 %v1960, %v1959
      %v1964 = vpack.c.b16 %v1961, %v1961
      %vm1967 = vcmask 293888
      %v1969 = vsel %vm1967, %v1924, 0
      %v1972 = vsel %vm1967, %v1925, 0
      %v1975 = vsel %vm1967, %v1926, 0
      %v1978 = vsel %vm1967, %v1927, 0
      %v1981 = vsel %vm1967, %v1928, 0
      %v1984 = vsel %vm1967, %v1929, 0
      %v1987 = vsel %vm1967, %v1930, 0
      %v1990 = vsel %vm1967, %v1931, 0
      %v1993 = vsel %vm1967, %v1932, 0
      %v1996 = vsel %vm1967, %v1933, 0
      %v1999 = vsel %vm1967, %v1934, 0
      %v2002 = vsel %vm1967, %v1935, 0
      %v2005 = vsel %vm1967, %v1936, 0
      %v2008 = vsel %vm1967, %v1937, 0
      %v2011 = vsel %vm1967, %v1938, 0
      %v2014 = vsel %vm1967, %v1939, 0
      %vm2016 = vcmask 1041408
      %v2018 = vsel %vm2016, %v1964, 0
      %2020 = vmatprep.subr.bf16.mxu0 0
      %2021 = vmatpush1.bf16.msra.mxu0 %v1962
      %2022 = vmatprep.subr.bf16.mxu0 0
      %2023 = vmatpush1.bf16.msra.mxu0 %v1963
      %2024 = vmatprep.subr.bf16.mxu0 0
      %2025 = vmatpush1.bf16.msra.mxu0 %v2018
      %2026 = vmatprep.subr.bf16.mxu0 0
      %2027 = vmatpush1.bf16.msra.mxu0 0
      %2028 = vmatprep.subr.bf16.mxu0 0
      %2029 = vmatpush1.bf16.msra.mxu0 0
      %2030 = vmatprep.subr.bf16.mxu0 0
      %2031 = vmatpush1.bf16.msra.mxu0 0
      %2032 = vmatprep.subr.bf16.mxu0 0
      %2033 = vmatpush1.bf16.msra.mxu0 0
      %2034 = vmatprep.subr.bf16.mxu0 0
      %2035 = vmatpush1.bf16.msra.mxu0 0
      %2036 = vmatprep.subr.bf16.mxu0 0
      %2037 = vmatpush1.bf16.msra.mxu0 0
      %2038 = vmatprep.subr.bf16.mxu0 0
      %2039 = vmatpush1.bf16.msra.mxu0 0
      %2040 = vmatprep.subr.bf16.mxu0 0
      %2041 = vmatpush1.bf16.msra.mxu0 0
      %2042 = vmatprep.subr.bf16.mxu0 0
      %2043 = vmatpush1.bf16.msra.mxu0 0
      %2044 = vmatprep.subr.bf16.mxu0 0
      %2045 = vmatpush1.bf16.msra.mxu0 0
      %2046 = vmatprep.subr.bf16.mxu0 0
      %2047 = vmatpush1.bf16.msra.mxu0 0
      %2048 = vmatprep.subr.bf16.mxu0 0
      %2049 = vmatpush1.bf16.msra.mxu0 0
      %2050 = vmatprep.subr.bf16.mxu0 0
      %2051 = vmatpush1.bf16.msra.mxu0 0
      %2052 = vmatprep.mubr.bf16.mxu0 0
      %2053 = vmatmul.mubr.bf16.gmra.mrb[0].mxu0 %v1969
      %v2054 = vpop.f32.mrb[0].mxu0
      %v2055 = vadd.f32 %v1950, %v2054
      %v2056 = vpop.f32.mrb[0].mxu0
      %v2057 = vpop.f32.mrb[0].mxu0
      %v2058 = vadd.f32 %v1950, %v2057
      %v2059 = vpop.f32.mrb[0].mxu0
      %2060 = vmatprep.mubr.bf16.mxu0 0
      %2061 = vmatmul.mubr.bf16.gmra.mrb[0].mxu0 %v1972
      %v2062 = vpop.f32.mrb[0].mxu0
      %v2063 = vadd.f32 %v1950, %v2062
      %v2064 = vpop.f32.mrb[0].mxu0
      %v2065 = vpop.f32.mrb[0].mxu0
      %v2066 = vadd.f32 %v1950, %v2065
      %v2067 = vpop.f32.mrb[0].mxu0
      %2068 = vmatprep.mubr.bf16.mxu0 0
      %2069 = vmatmul.mubr.bf16.gmra.mrb[0].mxu0 %v1975
      %v2070 = vpop.f32.mrb[0].mxu0
      %v2071 = vadd.f32 %v1950, %v2070
      %v2072 = vpop.f32.mrb[0].mxu0
      %v2073 = vpop.f32.mrb[0].mxu0
      %v2074 = vadd.f32 %v1950, %v2073
      %v2075 = vpop.f32.mrb[0].mxu0
      %2076 = vmatprep.mubr.bf16.mxu0 0
      %2077 = vmatmul.mubr.bf16.gmra.mrb[0].mxu0 %v1978
      %v2078 = vpop.f32.mrb[0].mxu0
      %v2079 = vadd.f32 %v1950, %v2078
      %v2080 = vpop.f32.mrb[0].mxu0
      %v2081 = vpop.f32.mrb[0].mxu0
      %v2082 = vadd.f32 %v1950, %v2081
      %v2083 = vpop.f32.mrb[0].mxu0
      %2084 = vmatprep.mubr.bf16.mxu0 0
      %2085 = vmatmul.mubr.bf16.gmra.mrb[0].mxu0 %v1981
      %v2086 = vpop.f32.mrb[0].mxu0
      %v2087 = vadd.f32 %v1950, %v2086
      %v2088 = vpop.f32.mrb[0].mxu0
      %v2089 = vpop.f32.mrb[0].mxu0
      %v2090 = vadd.f32 %v1950, %v2089
      %v2091 = vpop.f32.mrb[0].mxu0
      %2092 = vmatprep.mubr.bf16.mxu0 0
      %2093 = vmatmul.mubr.bf16.gmra.mrb[0].mxu0 %v1984
      %v2094 = vpop.f32.mrb[0].mxu0
      %v2095 = vadd.f32 %v1950, %v2094
      %v2096 = vpop.f32.mrb[0].mxu0
      %v2097 = vpop.f32.mrb[0].mxu0
      %v2098 = vadd.f32 %v1950, %v2097
      %v2099 = vpop.f32.mrb[0].mxu0
      %2100 = vmatprep.mubr.bf16.mxu0 0
      %2101 = vmatmul.mubr.bf16.gmra.mrb[0].mxu0 %v1987
      %v2102 = vpop.f32.mrb[0].mxu0
      %v2103 = vadd.f32 %v1950, %v2102
      %v2104 = vpop.f32.mrb[0].mxu0
      %v2105 = vpop.f32.mrb[0].mxu0
      %v2106 = vadd.f32 %v1950, %v2105
      %v2107 = vpop.f32.mrb[0].mxu0
      %2108 = vmatprep.mubr.bf16.mxu0 0
      %2109 = vmatmul.mubr.bf16.gmra.mrb[0].mxu0 %v1990
      %v2110 = vpop.f32.mrb[0].mxu0
      %v2111 = vadd.f32 %v1950, %v2110
      %v2112 = vpop.f32.mrb[0].mxu0
      %v2113 = vpop.f32.mrb[0].mxu0
      %v2114 = vadd.f32 %v1950, %v2113
      %v2115 = vpop.f32.mrb[0].mxu0
      %2116 = vmatprep.mubr.bf16.mxu0 0
      %2117 = vmatmul.mubr.bf16.gmra.mrb[0].mxu0 %v1993
      %v2118 = vpop.f32.mrb[0].mxu0
      %v2119 = vadd.f32 %v1950, %v2118
      %v2120 = vpop.f32.mrb[0].mxu0
      %v2121 = vpop.f32.mrb[0].mxu0
      %v2122 = vadd.f32 %v1950, %v2121
      %v2123 = vpop.f32.mrb[0].mxu0
      %2124 = vmatprep.mubr.bf16.mxu0 0
      %2125 = vmatmul.mubr.bf16.gmra.mrb[0].mxu0 %v1996
      %v2126 = vpop.f32.mrb[0].mxu0
      %v2127 = vadd.f32 %v1950, %v2126
      %v2128 = vpop.f32.mrb[0].mxu0
      %v2129 = vpop.f32.mrb[0].mxu0
      %v2130 = vadd.f32 %v1950, %v2129
      %v2131 = vpop.f32.mrb[0].mxu0
      %2132 = vmatprep.mubr.bf16.mxu0 0
      %2133 = vmatmul.mubr.bf16.gmra.mrb[0].mxu0 %v1999
      %v2134 = vpop.f32.mrb[0].mxu0
      %v2135 = vadd.f32 %v1950, %v2134
      %v2136 = vpop.f32.mrb[0].mxu0
      %v2137 = vpop.f32.mrb[0].mxu0
      %v2138 = vadd.f32 %v1950, %v2137
      %v2139 = vpop.f32.mrb[0].mxu0
      %2140 = vmatprep.mubr.bf16.mxu0 0
      %2141 = vmatmul.mubr.bf16.gmra.mrb[0].mxu0 %v2002
      %v2142 = vpop.f32.mrb[0].mxu0
      %v2143 = vadd.f32 %v1950, %v2142
      %v2144 = vpop.f32.mrb[0].mxu0
      %v2145 = vpop.f32.mrb[0].mxu0
      %v2146 = vadd.f32 %v1950, %v2145
      %v2147 = vpop.f32.mrb[0].mxu0
      %2148 = vmatprep.mubr.bf16.mxu0 0
      %2149 = vmatmul.mubr.bf16.gmra.mrb[0].mxu0 %v2005
      %v2150 = vpop.f32.mrb[0].mxu0
      %v2151 = vadd.f32 %v1950, %v2150
      %v2152 = vpop.f32.mrb[0].mxu0
      %v2153 = vpop.f32.mrb[0].mxu0
      %v2154 = vadd.f32 %v1950, %v2153
      %v2155 = vpop.f32.mrb[0].mxu0
      %2156 = vmatprep.mubr.bf16.mxu0 0
      %2157 = vmatmul.mubr.bf16.gmra.mrb[0].mxu0 %v2008
      %v2158 = vpop.f32.mrb[0].mxu0
      %v2159 = vadd.f32 %v1950, %v2158
      %v2160 = vpop.f32.mrb[0].mxu0
      %v2161 = vpop.f32.mrb[0].mxu0
      %v2162 = vadd.f32 %v1950, %v2161
      %v2163 = vpop.f32.mrb[0].mxu0
      %2164 = vmatprep.mubr.bf16.mxu0 0
      %2165 = vmatmul.mubr.bf16.gmra.mrb[0].mxu0 %v2011
      %v2166 = vpop.f32.mrb[0].mxu0
      %v2167 = vadd.f32 %v1950, %v2166
      %v2168 = vpop.f32.mrb[0].mxu0
      %v2169 = vpop.f32.mrb[0].mxu0
      %v2170 = vadd.f32 %v1950, %v2169
      %v2171 = vpop.f32.mrb[0].mxu0
      %2172 = vmatprep.mubr.bf16.mxu0 0
      %2173 = vmatmul.mubr.bf16.gmra.mrb[0].mxu0 %v2014
      %v2174 = vpop.f32.mrb[0].mxu0
      %v2175 = vadd.f32 %v1950, %v2174
      %v2176 = vpop.f32.mrb[0].mxu0
      %v2177 = vpop.f32.mrb[0].mxu0
      %v2178 = vadd.f32 %v1950, %v2177
      %v2179 = vpop.f32.mrb[0].mxu0
      %2180 = vdwg.mxu0
      %v2181 = vxor.u32 %v2055, 2147483648
      %v2182 = vxor.u32 %v2058, 2147483648
      %v2183 = vxor.u32 %v2063, 2147483648
      %v2184 = vxor.u32 %v2066, 2147483648
      %v2185 = vxor.u32 %v2071, 2147483648
      %v2186 = vxor.u32 %v2074, 2147483648
      %v2187 = vxor.u32 %v2079, 2147483648
      %v2188 = vxor.u32 %v2082, 2147483648
      %v2189 = vxor.u32 %v2087, 2147483648
      %v2190 = vxor.u32 %v2090, 2147483648
      %v2191 = vxor.u32 %v2095, 2147483648
      %v2192 = vxor.u32 %v2098, 2147483648
      %v2193 = vxor.u32 %v2103, 2147483648
      %v2194 = vxor.u32 %v2106, 2147483648
      %v2195 = vxor.u32 %v2111, 2147483648
      %v2196 = vxor.u32 %v2114, 2147483648
      %v2197 = vxor.u32 %v2119, 2147483648
      %v2198 = vxor.u32 %v2122, 2147483648
      %v2199 = vxor.u32 %v2127, 2147483648
      %v2200 = vxor.u32 %v2130, 2147483648
      %v2201 = vxor.u32 %v2135, 2147483648
      %v2202 = vxor.u32 %v2138, 2147483648
      %v2203 = vxor.u32 %v2143, 2147483648
      %v2204 = vxor.u32 %v2146, 2147483648
      %v2205 = vxor.u32 %v2151, 2147483648
      %v2206 = vxor.u32 %v2154, 2147483648
      %v2207 = vxor.u32 %v2159, 2147483648
      %v2208 = vxor.u32 %v2162, 2147483648
      %v2209 = vxor.u32 %v2167, 2147483648
      %v2210 = vxor.u32 %v2170, 2147483648
      %v2211 = vxor.u32 %v2175, 2147483648
      %v2212 = vxor.u32 %v2178, 2147483648
      %v2213 = vmul.f32 %v2181, 1.442695
      %v2214 = vpow.pop %v2213
      %v2215 = vmul.f32 %v2182, 1.442695
      %v2216 = vpow.pop %v2215
      %v2217 = vmul.f32 %v2183, 1.442695
      %v2218 = vpow.pop %v2217
      %v2219 = vmul.f32 %v2184, 1.442695
      %v2220 = vpow.pop %v2219
      %v2221 = vmul.f32 %v2185, 1.442695
      %v2222 = vpow.pop %v2221
      %v2223 = vmul.f32 %v2186, 1.442695
      %v2224 = vpow.pop %v2223
      %v2225 = vmul.f32 %v2187, 1.442695
      %v2226 = vpow.pop %v2225
      %v2227 = vmul.f32 %v2188, 1.442695
      %v2228 = vpow.pop %v2227
      %v2229 = vmul.f32 %v2189, 1.442695
      %v2230 = vpow.pop %v2229
      %v2231 = vmul.f32 %v2190, 1.442695
      %v2232 = vpow.pop %v2231
      %v2233 = vmul.f32 %v2191, 1.442695
      %v2234 = vpow.pop %v2233
      %v2235 = vmul.f32 %v2192, 1.442695
      %v2236 = vpow.pop %v2235
      %v2237 = vmul.f32 %v2193, 1.442695
      %v2238 = vpow.pop %v2237
      %v2239 = vmul.f32 %v2194, 1.442695
      %v2240 = vpow.pop %v2239
      %v2241 = vmul.f32 %v2195, 1.442695
      %v2242 = vpow.pop %v2241
      %v2243 = vmul.f32 %v2196, 1.442695
      %v2244 = vpow.pop %v2243
      %v2245 = vmul.f32 %v2197, 1.442695
      %v2246 = vpow.pop %v2245
      %v2247 = vmul.f32 %v2198, 1.442695
      %v2248 = vpow.pop %v2247
      %v2249 = vmul.f32 %v2199, 1.442695
      %v2250 = vpow.pop %v2249
      %v2251 = vmul.f32 %v2200, 1.442695
      %v2252 = vpow.pop %v2251
      %v2253 = vmul.f32 %v2201, 1.442695
      %v2254 = vpow.pop %v2253
      %v2255 = vmul.f32 %v2202, 1.442695
      %v2256 = vpow.pop %v2255
      %v2257 = vmul.f32 %v2203, 1.442695
      %v2258 = vpow.pop %v2257
      %v2259 = vmul.f32 %v2204, 1.442695
      %v2260 = vpow.pop %v2259
      %v2261 = vmul.f32 %v2205, 1.442695
      %v2262 = vpow.pop %v2261
      %v2263 = vmul.f32 %v2206, 1.442695
      %v2264 = vpow.pop %v2263
      %v2265 = vmul.f32 %v2207, 1.442695
      %v2266 = vpow.pop %v2265
      %v2267 = vmul.f32 %v2208, 1.442695
      %v2268 = vpow.pop %v2267
      %v2269 = vmul.f32 %v2209, 1.442695
      %v2270 = vpow.pop %v2269
      %v2271 = vmul.f32 %v2210, 1.442695
      %v2272 = vpow.pop %v2271
      %v2273 = vmul.f32 %v2211, 1.442695
      %v2274 = vpow.pop %v2273
      %v2275 = vmul.f32 %v2212, 1.442695
      %v2276 = vpow.pop %v2275
      %v2277 = vadd.f32 %v2214, 1.0
      %v2278 = vadd.f32 %v2216, 1.0
      %v2279 = vadd.f32 %v2218, 1.0
      %v2280 = vadd.f32 %v2220, 1.0
      %v2281 = vadd.f32 %v2222, 1.0
      %v2282 = vadd.f32 %v2224, 1.0
      %v2283 = vadd.f32 %v2226, 1.0
      %v2284 = vadd.f32 %v2228, 1.0
      %v2285 = vadd.f32 %v2230, 1.0
      %v2286 = vadd.f32 %v2232, 1.0
      %v2287 = vadd.f32 %v2234, 1.0
      %v2288 = vadd.f32 %v2236, 1.0
      %v2289 = vadd.f32 %v2238, 1.0
      %v2290 = vadd.f32 %v2240, 1.0
      %v2291 = vadd.f32 %v2242, 1.0
      %v2292 = vadd.f32 %v2244, 1.0
      %v2293 = vadd.f32 %v2246, 1.0
      %v2294 = vadd.f32 %v2248, 1.0
      %v2295 = vadd.f32 %v2250, 1.0
      %v2296 = vadd.f32 %v2252, 1.0
      %v2297 = vadd.f32 %v2254, 1.0
      %v2298 = vadd.f32 %v2256, 1.0
      %v2299 = vadd.f32 %v2258, 1.0
      %v2300 = vadd.f32 %v2260, 1.0
      %v2301 = vadd.f32 %v2262, 1.0
      %v2302 = vadd.f32 %v2264, 1.0
      %v2303 = vadd.f32 %v2266, 1.0
      %v2304 = vadd.f32 %v2268, 1.0
      %v2305 = vadd.f32 %v2270, 1.0
      %v2306 = vadd.f32 %v2272, 1.0
      %v2307 = vadd.f32 %v2274, 1.0
      %v2308 = vadd.f32 %v2276, 1.0
      %v2309 = vrcp.pop %v2277
      %v2310 = vmul.f32 1.0, %v2309
      %v2311 = vrcp.pop %v2278
      %v2312 = vmul.f32 1.0, %v2311
      %v2313 = vrcp.pop %v2279
      %v2314 = vmul.f32 1.0, %v2313
      %v2315 = vrcp.pop %v2280
      %v2316 = vmul.f32 1.0, %v2315
      %v2317 = vrcp.pop %v2281
      %v2318 = vmul.f32 1.0, %v2317
      %v2319 = vrcp.pop %v2282
      %v2320 = vmul.f32 1.0, %v2319
      %v2321 = vrcp.pop %v2283
      %v2322 = vmul.f32 1.0, %v2321
      %v2323 = vrcp.pop %v2284
      %v2324 = vmul.f32 1.0, %v2323
      %v2325 = vrcp.pop %v2285
      %v2326 = vmul.f32 1.0, %v2325
      %v2327 = vrcp.pop %v2286
      %v2328 = vmul.f32 1.0, %v2327
      %v2329 = vrcp.pop %v2287
      %v2330 = vmul.f32 1.0, %v2329
      %v2331 = vrcp.pop %v2288
      %v2332 = vmul.f32 1.0, %v2331
      %v2333 = vrcp.pop %v2289
      %v2334 = vmul.f32 1.0, %v2333
      %v2335 = vrcp.pop %v2290
      %v2336 = vmul.f32 1.0, %v2335
      %v2337 = vrcp.pop %v2291
      %v2338 = vmul.f32 1.0, %v2337
      %v2339 = vrcp.pop %v2292
      %v2340 = vmul.f32 1.0, %v2339
      %v2341 = vrcp.pop %v2293
      %v2342 = vmul.f32 1.0, %v2341
      %v2343 = vrcp.pop %v2294
      %v2344 = vmul.f32 1.0, %v2343
      %v2345 = vrcp.pop %v2295
      %v2346 = vmul.f32 1.0, %v2345
      %v2347 = vrcp.pop %v2296
      %v2348 = vmul.f32 1.0, %v2347
      %v2349 = vrcp.pop %v2297
      %v2350 = vmul.f32 1.0, %v2349
      %v2351 = vrcp.pop %v2298
      %v2352 = vmul.f32 1.0, %v2351
      %v2353 = vrcp.pop %v2299
      %v2354 = vmul.f32 1.0, %v2353
      %v2355 = vrcp.pop %v2300
      %v2356 = vmul.f32 1.0, %v2355
      %v2357 = vrcp.pop %v2301
      %v2358 = vmul.f32 1.0, %v2357
      %v2359 = vrcp.pop %v2302
      %v2360 = vmul.f32 1.0, %v2359
      %v2361 = vrcp.pop %v2303
      %v2362 = vmul.f32 1.0, %v2361
      %v2363 = vrcp.pop %v2304
      %v2364 = vmul.f32 1.0, %v2363
      %v2365 = vrcp.pop %v2305
      %v2366 = vmul.f32 1.0, %v2365
      %v2367 = vrcp.pop %v2306
      %v2368 = vmul.f32 1.0, %v2367
      %v2369 = vrcp.pop %v2307
      %v2370 = vmul.f32 1.0, %v2369
      %v2371 = vrcp.pop %v2308
      %v2372 = vmul.f32 1.0, %v2371
      %v2373 = vmul.f32 %v2055, %v2310
      %v2374 = vmul.f32 %v2058, %v2312
      %v2375 = vmul.f32 %v2063, %v2314
      %v2376 = vmul.f32 %v2066, %v2316
      %v2377 = vmul.f32 %v2071, %v2318
      %v2378 = vmul.f32 %v2074, %v2320
      %v2379 = vmul.f32 %v2079, %v2322
      %v2380 = vmul.f32 %v2082, %v2324
      %v2381 = vmul.f32 %v2087, %v2326
      %v2382 = vmul.f32 %v2090, %v2328
      %v2383 = vmul.f32 %v2095, %v2330
      %v2384 = vmul.f32 %v2098, %v2332
      %v2385 = vmul.f32 %v2103, %v2334
      %v2386 = vmul.f32 %v2106, %v2336
      %v2387 = vmul.f32 %v2111, %v2338
      %v2388 = vmul.f32 %v2114, %v2340
      %v2389 = vmul.f32 %v2119, %v2342
      %v2390 = vmul.f32 %v2122, %v2344
      %v2391 = vmul.f32 %v2127, %v2346
      %v2392 = vmul.f32 %v2130, %v2348
      %v2393 = vmul.f32 %v2135, %v2350
      %v2394 = vmul.f32 %v2138, %v2352
      %v2395 = vmul.f32 %v2143, %v2354
      %v2396 = vmul.f32 %v2146, %v2356
      %v2397 = vmul.f32 %v2151, %v2358
      %v2398 = vmul.f32 %v2154, %v2360
      %v2399 = vmul.f32 %v2159, %v2362
      %v2400 = vmul.f32 %v2162, %v2364
      %v2401 = vmul.f32 %v2167, %v2366
      %v2402 = vmul.f32 %v2170, %v2368
      %v2403 = vmul.f32 %v2175, %v2370
      %v2404 = vmul.f32 %v2178, %v2372
      %v2405 = vmul.f32 %v254, 0.2
      %v2406 = vmul.f32 %v255, 0.2
      %v2407 = vmul.f32 %v256, 0.2
      %v2408 = vmul.f32 %v257, 0.2
      %v2409 = vmul.f32 %v258, 0.2
      %v2410 = vmul.f32 %v259, 0.2
      %v2411 = vmul.f32 %v260, 0.2
      %v2412 = vmul.f32 %v261, 0.2
      %v2413 = vmul.f32 %v262, 0.2
      %v2414 = vmul.f32 %v263, 0.2
      %v2415 = vmul.f32 %v264, 0.2
      %v2416 = vmul.f32 %v265, 0.2
      %v2417 = vmul.f32 %v266, 0.2
      %v2418 = vmul.f32 %v267, 0.2
      %v2419 = vmul.f32 %v268, 0.2
      %v2420 = vmul.f32 %v269, 0.2
      %v2421 = vmul.f32 %v270, 0.2
      %v2422 = vmul.f32 %v271, 0.2
      %v2423 = vmul.f32 %v272, 0.2
      %v2424 = vmul.f32 %v273, 0.2
      %v2425 = vmul.f32 %v274, 0.2
      %v2426 = vmul.f32 %v275, 0.2
      %v2427 = vmul.f32 %v276, 0.2
      %v2428 = vmul.f32 %v277, 0.2
      %v2429 = vmul.f32 %v278, 0.2
      %v2430 = vmul.f32 %v279, 0.2
      %v2431 = vmul.f32 %v280, 0.2
      %v2432 = vmul.f32 %v281, 0.2
      %v2433 = vmul.f32 %v282, 0.2
      %v2434 = vmul.f32 %v283, 0.2
      %v2435 = vmul.f32 %v284, 0.2
      %v2436 = vmul.f32 %v285, 0.2
      %s2437 = sld [smem:[#allocation4]]
      %v2438 = vstv %s2437
      %v2439 = vmul.f32 %v2373, %v2438
      %v2440 = vmul.f32 %v2374, %v2438
      %v2441 = vmul.f32 %v2375, %v2438
      %v2442 = vmul.f32 %v2376, %v2438
      %v2443 = vmul.f32 %v2377, %v2438
      %v2444 = vmul.f32 %v2378, %v2438
      %v2445 = vmul.f32 %v2379, %v2438
      %v2446 = vmul.f32 %v2380, %v2438
      %v2447 = vmul.f32 %v2381, %v2438
      %v2448 = vmul.f32 %v2382, %v2438
      %v2449 = vmul.f32 %v2383, %v2438
      %v2450 = vmul.f32 %v2384, %v2438
      %v2451 = vmul.f32 %v2385, %v2438
      %v2452 = vmul.f32 %v2386, %v2438
      %v2453 = vmul.f32 %v2387, %v2438
      %v2454 = vmul.f32 %v2388, %v2438
      %v2455 = vmul.f32 %v2389, %v2438
      %v2456 = vmul.f32 %v2390, %v2438
      %v2457 = vmul.f32 %v2391, %v2438
      %v2458 = vmul.f32 %v2392, %v2438
      %v2459 = vmul.f32 %v2393, %v2438
      %v2460 = vmul.f32 %v2394, %v2438
      %v2461 = vmul.f32 %v2395, %v2438
      %v2462 = vmul.f32 %v2396, %v2438
      %v2463 = vmul.f32 %v2397, %v2438
      %v2464 = vmul.f32 %v2398, %v2438
      %v2465 = vmul.f32 %v2399, %v2438
      %v2466 = vmul.f32 %v2400, %v2438
      %v2467 = vmul.f32 %v2401, %v2438
      %v2468 = vmul.f32 %v2402, %v2438
      %v2469 = vmul.f32 %v2403, %v2438
      %v2470 = vmul.f32 %v2404, %v2438
      %v2471 = vadd.f32 %v2405, %v2439
      %v2472 = vadd.f32 %v2406, %v2440
      %v2473 = vadd.f32 %v2407, %v2441
      %v2474 = vadd.f32 %v2408, %v2442
      %v2475 = vadd.f32 %v2409, %v2443
      %v2476 = vadd.f32 %v2410, %v2444
      %v2477 = vadd.f32 %v2411, %v2445
      %v2478 = vadd.f32 %v2412, %v2446
      %v2479 = vadd.f32 %v2413, %v2447
      %v2480 = vadd.f32 %v2414, %v2448
      %v2481 = vadd.f32 %v2415, %v2449
      %v2482 = vadd.f32 %v2416, %v2450
      %v2483 = vadd.f32 %v2417, %v2451
      %v2484 = vadd.f32 %v2418, %v2452
      %v2485 = vadd.f32 %v2419, %v2453
      %v2486 = vadd.f32 %v2420, %v2454
      %v2487 = vadd.f32 %v2421, %v2455
      %v2488 = vadd.f32 %v2422, %v2456
      %v2489 = vadd.f32 %v2423, %v2457
      %v2490 = vadd.f32 %v2424, %v2458
      %v2491 = vadd.f32 %v2425, %v2459
      %v2492 = vadd.f32 %v2426, %v2460
      %v2493 = vadd.f32 %v2427, %v2461
      %v2494 = vadd.f32 %v2428, %v2462
      %v2495 = vadd.f32 %v2429, %v2463
      %v2496 = vadd.f32 %v2430, %v2464
      %v2497 = vadd.f32 %v2431, %v2465
      %v2498 = vadd.f32 %v2432, %v2466
      %v2499 = vadd.f32 %v2433, %v2467
      %v2500 = vadd.f32 %v2434, %v2468
      %v2501 = vadd.f32 %v2435, %v2469
      %v2502 = vadd.f32 %v2436, %v2470
      %2503 = vst.msk [vmem:[%s252] sm:$0xff] %vm310, %v2471
      %2504 = vst.msk [vmem:[%s252 + $0x8] sm:$0xff] %vm310, %v2472
      %2505 = vst.msk [vmem:[%s252 + $0x10] sm:$0xff] %vm310, %v2473
      %2506 = vst.msk [vmem:[%s252 + $0x18] sm:$0xff] %vm310, %v2474
      %2507 = vst.msk [vmem:[%s252 + $0x20] sm:$0xff] %vm310, %v2475
      %2508 = vst.msk [vmem:[%s252 + $0x28] sm:$0xff] %vm310, %v2476
      %2509 = vst.msk [vmem:[%s252 + $0x30] sm:$0xff] %vm310, %v2477
      %2510 = vst.msk [vmem:[%s252 + $0x38] sm:$0xff] %vm310, %v2478
      %2511 = vst.msk [vmem:[%s252 + $0x40] sm:$0xff] %vm310, %v2479
      %2512 = vst.msk [vmem:[%s252 + $0x48] sm:$0xff] %vm310, %v2480
      %2513 = vst.msk [vmem:[%s252 + $0x50] sm:$0xff] %vm310, %v2481
      %2514 = vst.msk [vmem:[%s252 + $0x58] sm:$0xff] %vm310, %v2482
      %2515 = vst.msk [vmem:[%s252 + $0x60] sm:$0xff] %vm310, %v2483
      %2516 = vst.msk [vmem:[%s252 + $0x68] sm:$0xff] %vm310, %v2484
      %2517 = vst.msk [vmem:[%s252 + $0x70] sm:$0xff] %vm310, %v2485
      %2518 = vst.msk [vmem:[%s252 + $0x78] sm:$0xff] %vm310, %v2486
      %2519 = vst.msk [vmem:[%s252 + $0x80] sm:$0xff] %vm310, %v2487
      %2520 = vst.msk [vmem:[%s252 + $0x88] sm:$0xff] %vm310, %v2488
      %2521 = vst.msk [vmem:[%s252 + $0x90] sm:$0xff] %vm310, %v2489
      %2522 = vst.msk [vmem:[%s252 + $0x98] sm:$0xff] %vm310, %v2490
      %2523 = vst.msk [vmem:[%s252 + $0xa0] sm:$0xff] %vm310, %v2491
      %2524 = vst.msk [vmem:[%s252 + $0xa8] sm:$0xff] %vm310, %v2492
      %2525 = vst.msk [vmem:[%s252 + $0xb0] sm:$0xff] %vm310, %v2493
      %2526 = vst.msk [vmem:[%s252 + $0xb8] sm:$0xff] %vm310, %v2494
      %2527 = vst.msk [vmem:[%s252 + $0xc0] sm:$0xff] %vm310, %v2495
      %2528 = vst.msk [vmem:[%s252 + $0xc8] sm:$0xff] %vm310, %v2496
      %2529 = vst.msk [vmem:[%s252 + $0xd0] sm:$0xff] %vm310, %v2497
      %2530 = vst.msk [vmem:[%s252 + $0xd8] sm:$0xff] %vm310, %v2498
      %2531 = vst.msk [vmem:[%s252 + $0xe0] sm:$0xff] %vm310, %v2499
      %2532 = vst.msk [vmem:[%s252 + $0xe8] sm:$0xff] %vm310, %v2500
      %2533 = vst.msk [vmem:[%s252 + $0xf0] sm:$0xff] %vm310, %v2501
      %2534 = vst.msk [vmem:[%s252 + $0xf8] sm:$0xff] %vm310, %v2502
      %p2535 = scmp.lt.s32.totalorder %s18, 1
      %s2536 = scalar_select %p2535, %s18, 1
      %s2537 = smul.addr %s2536, 32
      %s2538 = smul.addr %s2537, 8
      %s2539 = scalar_lea.vmem %s6, %s2538
      // Predicated region
      $region45: #{tpu_custom_call.1} parent=43 // pred_check
        %p2540 = pneg %p167
      $region46: #{tpu_custom_call.1} parent=43 // pred_check_branch
        %2542 = sbr.rel (%p2540) target = $region48
      $region47: #{tpu_custom_call.1} parent=43 // pred_region
        _
      $region48: #{tpu_custom_call.1} parent=43 // pred_fallthru
        _
    $region44: #{tpu_custom_call.1} parent=5 // pred_fallthru
      _
    %p2543 = scmp.le.s32.totalorder 2, %s13
    // Predicated region
    $region49: #{tpu_custom_call.1} parent=5 // pred_check
      %p2544 = pneg %p2543
    $region50: #{tpu_custom_call.1} parent=5 // pred_check_branch
      %2546 = sbr.rel (%p2544) target = $region52
    $region51: #{tpu_custom_call.1} parent=5 // pred_region
      %s2547 = ssub.s32 %s13, 2
      // Predicated region
      $region53: #{tpu_custom_call.1} parent=51 // pred_check
        %p2548 = pneg %p173
      $region54: #{tpu_custom_call.1} parent=51 // pred_check_branch
        %2550 = sbr.rel (%p2548) target = $region56
      $region55: #{tpu_custom_call.1} parent=51 // pred_region
        %p2551 = scmp.lt.s32.totalorder %s19, 1
        %s2552 = scalar_select %p2551, %s19, 1
        %s2553 = smul.addr %s2552, 32
        %s2554 = smul.addr %s2553, 8
        %s2555 = scalar_lea.vmem %s6, %s2554
      $region56: #{tpu_custom_call.1} parent=51 // pred_fallthru
        _
    $region52: #{tpu_custom_call.1} parent=5 // pred_fallthru
      _
  $region6: #{tpu_custom_call.1} parent=0 // loop_footer
    %s17 = sadd.s32 1, %s13
  $region7: #{tpu_custom_call.1} parent=0 // loop_footer_branch
    %12 = sbr.rel target = $region3
  $region8: #{tpu_custom_call.1} parent=0 // loop_exit
    _

</llo_original>
